<compile_context>
chip_gen: v5e
topology: v5e:2x2
jax: 0.10.0
libtpu: 0.0.40
codegen_flags: <defaults>
</compile_context>

<pallas_src>
import functools

import jax
import jax.numpy as jnp
from jax import lax
from jax.experimental import pallas as pl


# ----------------------------------------------------------------------------
# Shared LSTM cell (traced inline inside the kernels).
# Gate layout along the 4*Hd axis is (i, f, o, g): one sigmoid over [0:3*Hd],
# one tanh over [3*Hd:4*Hd]; all slices lane-aligned when Hd % 128 == 0.
# ----------------------------------------------------------------------------
def _lstm_cell(x, h, c, w_ih, w_hh, b, Hd):
    gates = (jnp.dot(x, w_ih, preferred_element_type=jnp.float32)
             + jnp.dot(h, w_hh, preferred_element_type=jnp.float32)
             + b)                                           # (B, 4*Hd)
    ifo = jax.nn.sigmoid(gates[:, 0:3 * Hd])                # single EUP pass
    g = jnp.tanh(gates[:, 3 * Hd:4 * Hd])
    i = ifo[:, 0 * Hd:1 * Hd]
    f = ifo[:, 1 * Hd:2 * Hd]
    o = ifo[:, 2 * Hd:3 * Hd]
    c_new = f * c + i * g
    h_new = o * jnp.tanh(c_new)
    return h_new, c_new


# ----------------------------------------------------------------------------
# Encoder: single-layer LSTM over the whole source sequence in one kernel.
# ----------------------------------------------------------------------------
def _encoder_lstm_kernel(x_ref, w_ih_ref, w_hh_ref, b_ref, out_ref):
    # x_ref: (T, B, E) time-major embedded tokens; out_ref: (T, B, Hd)
    T, B, _ = x_ref.shape
    Hd = out_ref.shape[-1]

    def step(t, carry):
        h, c = carry
        h, c = _lstm_cell(x_ref[t], h, c,
                          w_ih_ref[...], w_hh_ref[...], b_ref[...], Hd)
        out_ref[t] = h
        return (h, c)

    z = jnp.zeros((B, Hd), jnp.float32)
    lax.fori_loop(0, T, step, (z, z))


def run_encoder(emb_x_tbe, w_ih, w_hh, b):
    T, B, _ = emb_x_tbe.shape
    Hd = w_hh.shape[0]
    return pl.pallas_call(
        _encoder_lstm_kernel,
        out_shape=jax.ShapeDtypeStruct((T, B, Hd), jnp.float32),
    )(emb_x_tbe, w_ih, w_hh, b)


# ----------------------------------------------------------------------------
# Hoisted (non-recurrent) decoder projections, batched over M = B*Td rows:
#   score_e = emb @ Wa_e + ba      (attention, embedding half)
#   comb_e  = emb @ Wc_e + bc      (combine,   embedding half)
# ----------------------------------------------------------------------------
def _emb_proj_kernel(x_ref, wa_ref, ba_ref, wc_ref, bc_ref, score_ref, comb_ref):
    x = x_ref[...]
    score_ref[...] = (jnp.dot(x, wa_ref[...], preferred_element_type=jnp.float32)
                      + ba_ref[...])
    comb_ref[...] = (jnp.dot(x, wc_ref[...], preferred_element_type=jnp.float32)
                     + bc_ref[...])


def run_emb_projections(emb2d, wa_e, ba, wc_e, bc):
    M = emb2d.shape[0]
    return pl.pallas_call(
        _emb_proj_kernel,
        out_shape=(jax.ShapeDtypeStruct((M, wa_e.shape[1]), jnp.float32),
                   jax.ShapeDtypeStruct((M, wc_e.shape[1]), jnp.float32)),
    )(emb2d, wa_e, ba, wc_e, bc)


# ----------------------------------------------------------------------------
# Recurrent attention decoder: per step
#   scores  = score_e[t] + h_top @ Wa_h        -> softmax over encoder positions
#   context = sum_s attn_w[:, s] * enc[s]
#   x_in    = relu(comb_e[t] + context @ Wc_a)
#   stacked LSTM step; emit top-layer hidden.  (Output proj/softmax is hoisted.)
# ----------------------------------------------------------------------------
def _attn_decoder_recurrent_kernel(score_e_ref, comb_e_ref, enc_ref,
                                   h0_ref, c0_ref,
                                   wa_h_ref, wc_a_ref,
                                   w_ih_ref, w_hh_ref, b_ref,
                                   hout_ref, *, num_layers):
    # score_e_ref: (Td, B, Tin)   hoisted emb@Wa_e + ba
    # comb_e_ref : (Td, B, Hd)    hoisted emb@Wc_e + bc
    # enc_ref    : (Tin, B, Hd)   time-major encoder outputs (attention memory)
    # h0/c0_ref  : (L, B, Hd)     initial stacked-LSTM state
    # hout_ref   : (Td, B, Hd)    top-layer hidden per decode step
    Td = score_e_ref.shape[0]
    Tin = enc_ref.shape[0]
    Hd = hout_ref.shape[-1]

    def step(t, carry):
        hs, cs = carry
        h_top = hs[num_layers - 1]               # previous step's top-layer hidden

        # attention over the fixed-length encoder positions (recurrent half only)
        scores = score_e_ref[t] + jnp.dot(h_top, wa_h_ref[...],
                                          preferred_element_type=jnp.float32)
        scores = scores - jnp.max(scores, axis=-1, keepdims=True)
        p = jnp.exp(scores)
        attn_w = p * pl.reciprocal(jnp.sum(p, axis=-1, keepdims=True), approx=True)

        # attention context, unrolled over the static encoder length: VALU
        # lane-broadcast mult-adds only (no (B,Tin,Hd) temp, no XLU reduce).
        ctx = attn_w[:, 0:1] * enc_ref[0]
        for s in range(1, Tin):
            ctx = ctx + attn_w[:, s:s + 1] * enc_ref[s]      # (B, Hd)

        # combine embedded token with attention context, then relu
        x_in = jnp.maximum(
            comb_e_ref[t] + jnp.dot(ctx, wc_a_ref[...],
                                    preferred_element_type=jnp.float32), 0.0)

        new_hs, new_cs = [], []
        for l in range(num_layers):
            h_l, c_l = _lstm_cell(x_in, hs[l], cs[l],
                                  w_ih_ref[l], w_hh_ref[l], b_ref[l], Hd)
            new_hs.append(h_l)
            new_cs.append(c_l)
            x_in = h_l

        hout_ref[t] = x_in
        return (tuple(new_hs), tuple(new_cs))

    h_init = tuple(h0_ref[l] for l in range(num_layers))
    c_init = tuple(c0_ref[l] for l in range(num_layers))
    lax.fori_loop(0, Td, step, (h_init, c_init))


def run_decoder_recurrent(score_e, comb_e, enc_tbh, H0, C0, params):
    Td, B, _ = comb_e.shape
    L, _, Hd = H0.shape
    kernel = functools.partial(_attn_decoder_recurrent_kernel, num_layers=L)
    return pl.pallas_call(
        kernel,
        out_shape=jax.ShapeDtypeStruct((Td, B, Hd), jnp.float32),
    )(score_e, comb_e, enc_tbh, H0, C0,
      params["wa_h"], params["wc_a"],
      params["w_ih_dec"], params["w_hh_dec"], params["b_dec"])


# ----------------------------------------------------------------------------
# Hoisted output projection + softmax over the target vocab, M = B*Td rows,
# lane-dense (V multiple of 128) output store.
# ----------------------------------------------------------------------------
def _linear_softmax_kernel(x_ref, w_ref, b_ref, o_ref):
    logits = (jnp.dot(x_ref[...], w_ref[...], preferred_element_type=jnp.float32)
              + b_ref[...])
    logits = logits - jnp.max(logits, axis=-1, keepdims=True)
    e = jnp.exp(logits)
    o_ref[...] = e * pl.reciprocal(jnp.sum(e, axis=-1, keepdims=True), approx=True)


def run_output_softmax(h2d, w_out, b_out):
    M = h2d.shape[0]
    V = w_out.shape[1]
    return pl.pallas_call(
        _linear_softmax_kernel,
        out_shape=jax.ShapeDtypeStruct((M, V), jnp.float32),
    )(h2d, w_out, b_out)


# ----------------------------------------------------------------------------
# Full forward pass = EncoderAttnDecoder.forward (teacher forcing)
# ----------------------------------------------------------------------------
def encoder_attn_decoder_forward(params, X, y, num_layers):
    B = X.shape[0]
    Td = y.shape[1]
    Hd = params["w_hh_enc"].shape[0]
    V = params["w_out"].shape[-1]

    # ---------------- encoder ----------------
    emb_x = params["emb_src"][X]                        # (B, T_in, E)  gather in plain JAX
    emb_x_tbe = jnp.transpose(emb_x, (1, 0, 2))         # (T_in, B, E)  time-major
    enc_tbh = run_encoder(emb_x_tbe, params["w_ih_enc"], params["w_hh_enc"],
                          params["b_enc"])              # (T_in, B, Hd)

    # context = encoded_input[:, -1, :]; H = context repeated over layers; C = 0
    context = enc_tbh[-1]                               # (B, Hd)
    H0 = jnp.broadcast_to(context[None, :, :], (num_layers, B, Hd)).astype(jnp.float32)
    C0 = jnp.zeros((num_layers, B, Hd), jnp.float32)

    # -------- decoder: hoisted non-recurrent projections (M = B*Td) --------
    emb_y = params["emb_tgt"][y]                        # (B, Td, E)
    E = emb_y.shape[-1]
    emb_y2d = jnp.transpose(emb_y, (1, 0, 2)).reshape(Td * B, E)   # row = t*B + b
    score_e2d, comb_e2d = run_emb_projections(
        emb_y2d, params["wa_e"], params["ba"], params["wc_e"], params["bc"])
    T_in = params["wa_e"].shape[1]
    score_e = score_e2d.reshape(Td, B, T_in)            # (Td, B, T_in)
    comb_e = comb_e2d.reshape(Td, B, Hd)                # (Td, B, Hd)

    # -------- decoder: recurrent attention + stacked LSTM (time in-kernel) --
    h_top = run_decoder_recurrent(score_e, comb_e, enc_tbh, H0, C0, params)  # (Td,B,Hd)

    # -------- decoder: batched output projection + softmax ------------------
    dist2d = run_output_softmax(h_top.reshape(Td * B, Hd),
                                params["w_out"], params["b_out"])   # (Td*B, V)
    outputs = jnp.transpose(dist2d.reshape(Td, B, V), (1, 0, 2))     # (B, Td, V)
    return outputs


def init_params(key, V_src, V_tgt, E, Hd, T_in, L):
    ks = jax.random.split(key, 16)
    s = 0.1

    def n(k, shape):
        return (s * jax.random.normal(k, shape)).astype(jnp.float32)

    return {
        # encoder (single-layer LSTM); gate order (i, f, o, g)
        "emb_src": n(ks[0], (V_src, E)),
        "w_ih_enc": n(ks[1], (E, 4 * Hd)),
        "w_hh_enc": n(ks[2], (Hd, 4 * Hd)),
        "b_enc": n(ks[3], (1, 4 * Hd)),
        # decoder
        "emb_tgt": n(ks[4], (V_tgt, E)),
        "wa_e": n(ks[5], (E, T_in)),          # attn Linear(E+Hd -> T_in), emb half
        "wa_h": n(ks[6], (Hd, T_in)),         # attn Linear(E+Hd -> T_in), hidden half
        "ba": n(ks[7], (1, T_in)),
        "wc_e": n(ks[8], (E, Hd)),            # combine Linear(E+Hd -> Hd), emb half
        "wc_a": n(ks[9], (Hd, Hd)),           # combine Linear(E+Hd -> Hd), ctx half
        "bc": n(ks[10], (1, Hd)),
        "w_ih_dec": n(ks[11], (L, Hd, 4 * Hd)),   # stacked decoder LSTM (i, f, o, g)
        "w_hh_dec": n(ks[12], (L, Hd, 4 * Hd)),
        "b_dec": n(ks[13], (L, 1, 4 * Hd)),
        "w_out": n(ks[14], (Hd, V_tgt)),
        "b_out": n(ks[15], (1, V_tgt)),
    }


if __name__ == "__main__":
    # Shapes chosen sublane/lane aligned (B multiple of 8; E, Hd, V multiples of
    # 128) so LSTM gate slices are lane-aligned and the vocab-wide output store
    # is unmasked.  T_in == encoder_max_length (fixed, required by the attention).
    B, T_in, T_dec = 8, 8, 8
    E, Hd, L = 128, 128, 2
    V_src, V_tgt = 256, 256

    key = jax.random.PRNGKey(0)
    pkey, xkey, ykey = jax.random.split(key, 3)
    params = init_params(pkey, V_src, V_tgt, E, Hd, T_in, L)

    X = jax.random.randint(xkey, (B, T_in), 0, V_src, dtype=jnp.int32)
    y = jax.random.randint(ykey, (B, T_dec), 0, V_tgt, dtype=jnp.int32)

    fwd = jax.jit(functools.partial(encoder_attn_decoder_forward, num_layers=L))
    outputs = jax.block_until_ready(fwd(params, X, y))

    assert outputs.shape == (B, T_dec, V_tgt)
    assert bool(jnp.all(jnp.isfinite(outputs)))
    # each timestep's output is a softmax distribution over the target vocab
    # (approx-reciprocal softmax denominator => slightly looser tolerance)
    assert bool(jnp.allclose(jnp.sum(outputs, axis=-1), 1.0, atol=5e-3))

    # TODO(synk): predict_step (greedy argmax decoding loop) not implemented; only forward() requested.
    print("KERNEL_OK")
</pallas_src>

<mosaic_0001>
module attributes {stable_mosaic.version = 11 : i64} {
  func.func @_encoder_lstm_kernel(%arg0: memref<8x8x128xf32, #tpu.memory_space<vmem>>, %arg1: memref<128x512xf32, #tpu.memory_space<vmem>>, %arg2: memref<128x512xf32, #tpu.memory_space<vmem>>, %arg3: memref<1x512xf32, #tpu.memory_space<vmem>>, %arg4: memref<8x8x128xf32, #tpu.memory_space<vmem>>) attributes {dimension_semantics = [], scalar_prefetch = 0 : i64, scratch_operands = 0 : i64, tpu.core_type = #tpu.core_type<tc>} {
    %cst = arith.constant 0.000000e+00 : f32
    %0 = vector.broadcast %cst : f32 to vector<8x128xf32>
    %c0_i32 = arith.constant 0 : i32
    %c8_i32 = arith.constant 8 : i32
    %1 = arith.addi %c0_i32, %c8_i32 : i32
    %c1_i32 = arith.constant 1 : i32
    %2:2 = scf.for %arg5 = %c0_i32 to %1 step %c1_i32 iter_args(%arg6 = %0, %arg7 = %0) -> (vector<8x128xf32>, vector<8x128xf32>)  : i32 {
      %3 = arith.index_cast %arg5 : i32 to index
      %c0 = arith.constant 0 : index
      %c0_1 = arith.constant 0 : index
      %4 = vector.load %arg0[%3, %c0, %c0_1] : memref<8x8x128xf32, #tpu.memory_space<vmem>>, vector<1x8x128xf32>
      %5 = vector.shape_cast %4 : vector<1x8x128xf32> to vector<8x128xf32>
      %c0_2 = arith.constant 0 : index
      %c0_3 = arith.constant 0 : index
      %6 = vector.load %arg1[%c0_2, %c0_3] : memref<128x512xf32, #tpu.memory_space<vmem>>, vector<128x512xf32>
      %c0_4 = arith.constant 0 : index
      %c0_5 = arith.constant 0 : index
      %7 = vector.load %arg2[%c0_4, %c0_5] : memref<128x512xf32, #tpu.memory_space<vmem>>, vector<128x512xf32>
      %c0_6 = arith.constant 0 : index
      %c0_7 = arith.constant 0 : index
      %8 = vector.load %arg3[%c0_6, %c0_7] : memref<1x512xf32, #tpu.memory_space<vmem>>, vector<1x512xf32>
      %cst_8 = arith.constant dense<0.000000e+00> : vector<8x512xf32>
      %9 = tpu.matmul %5, %6, %cst_8 {dimension_numbers = #tpu.dot_dimension_numbers<[1], [0], [0], [1], [0, 0, 1, 1], [], []>} : vector<8x128xf32>, vector<128x512xf32>, vector<8x512xf32> -> vector<8x512xf32>
      %cst_9 = arith.constant dense<0.000000e+00> : vector<8x512xf32>
      %10 = tpu.matmul %arg6, %7, %cst_9 {dimension_numbers = #tpu.dot_dimension_numbers<[1], [0], [0], [1], [0, 0, 1, 1], [], []>} : vector<8x128xf32>, vector<128x512xf32>, vector<8x512xf32> -> vector<8x512xf32>
      %11 = arith.addf %9, %10 : vector<8x512xf32>
      %12 = vector.broadcast %8 : vector<1x512xf32> to vector<8x512xf32>
      %13 = arith.addf %11, %12 : vector<8x512xf32>
      %14 = vector.extract_strided_slice %13 {offsets = [0, 0], sizes = [8, 384], strides = [1, 1]} : vector<8x512xf32> to vector<8x384xf32>
      %15 = arith.negf %14 : vector<8x384xf32>
      %16 = math.exp %15 : vector<8x384xf32>
      %cst_10 = arith.constant 1.000000e+00 : f32
      %17 = vector.broadcast %cst_10 : f32 to vector<8x384xf32>
      %18 = arith.addf %17, %16 : vector<8x384xf32>
      %19 = arith.divf %17, %18 : vector<8x384xf32>
      %20 = vector.extract_strided_slice %13 {offsets = [0, 384], sizes = [8, 128], strides = [1, 1]} : vector<8x512xf32> to vector<8x128xf32>
      %21 = math.tanh %20 : vector<8x128xf32>
      %22 = vector.extract_strided_slice %19 {offsets = [0, 0], sizes = [8, 128], strides = [1, 1]} : vector<8x384xf32> to vector<8x128xf32>
      %23 = vector.extract_strided_slice %19 {offsets = [0, 128], sizes = [8, 128], strides = [1, 1]} : vector<8x384xf32> to vector<8x128xf32>
      %24 = vector.extract_strided_slice %19 {offsets = [0, 256], sizes = [8, 128], strides = [1, 1]} : vector<8x384xf32> to vector<8x128xf32>
      %25 = arith.mulf %23, %arg7 : vector<8x128xf32>
      %26 = arith.mulf %22, %21 : vector<8x128xf32>
      %27 = arith.addf %25, %26 : vector<8x128xf32>
      %28 = math.tanh %27 : vector<8x128xf32>
      %29 = arith.mulf %24, %28 : vector<8x128xf32>
      %30 = arith.index_cast %arg5 : i32 to index
      %c0_11 = arith.constant 0 : index
      %c0_12 = arith.constant 0 : index
      %31 = vector.load %arg4[%30, %c0_11, %c0_12] : memref<8x8x128xf32, #tpu.memory_space<vmem>>, vector<1x8x128xf32>
      %32 = vector.shape_cast %31 : vector<1x8x128xf32> to vector<8x128xf32>
      %33 = vector.shape_cast %29 : vector<8x128xf32> to vector<1x8x128xf32>
      tpu.vector_store %arg4[%30, %c0_11, %c0_12], %33 {strides = array<i32>} : memref<8x8x128xf32, #tpu.memory_space<vmem>>, vector<1x8x128xf32>,
      scf.yield %29, %27 : vector<8x128xf32>, vector<8x128xf32>
    }
    %c8_i32_0 = arith.constant 8 : i32
    return
  }
}

module attributes {stable_mosaic.version = 11 : i64} {
  func.func @_emb_proj_kernel(%arg0: memref<64x128xf32, #tpu.memory_space<vmem>>, %arg1: memref<128x8xf32, #tpu.memory_space<vmem>>, %arg2: memref<1x8xf32, #tpu.memory_space<vmem>>, %arg3: memref<128x128xf32, #tpu.memory_space<vmem>>, %arg4: memref<1x128xf32, #tpu.memory_space<vmem>>, %arg5: memref<64x8xf32, #tpu.memory_space<vmem>>, %arg6: memref<64x128xf32, #tpu.memory_space<vmem>>) attributes {dimension_semantics = [], scalar_prefetch = 0 : i64, scratch_operands = 0 : i64, tpu.core_type = #tpu.core_type<tc>} {
    %c0 = arith.constant 0 : index
    %c0_0 = arith.constant 0 : index
    %0 = vector.load %arg0[%c0, %c0_0] : memref<64x128xf32, #tpu.memory_space<vmem>>, vector<64x128xf32>
    %c0_1 = arith.constant 0 : index
    %c0_2 = arith.constant 0 : index
    %1 = vector.load %arg1[%c0_1, %c0_2] : memref<128x8xf32, #tpu.memory_space<vmem>>, vector<128x8xf32>
    %cst = arith.constant dense<0.000000e+00> : vector<64x8xf32>
    %2 = tpu.matmul %0, %1, %cst {dimension_numbers = #tpu.dot_dimension_numbers<[1], [0], [0], [1], [0, 0, 1, 1], [], []>} : vector<64x128xf32>, vector<128x8xf32>, vector<64x8xf32> -> vector<64x8xf32>
    %c0_3 = arith.constant 0 : index
    %c0_4 = arith.constant 0 : index
    %3 = vector.load %arg2[%c0_3, %c0_4] : memref<1x8xf32, #tpu.memory_space<vmem>>, vector<1x8xf32>
    %4 = vector.broadcast %3 : vector<1x8xf32> to vector<64x8xf32>
    %5 = arith.addf %2, %4 : vector<64x8xf32>
    %c0_5 = arith.constant 0 : index
    %c0_6 = arith.constant 0 : index
    %6 = vector.load %arg5[%c0_5, %c0_6] : memref<64x8xf32, #tpu.memory_space<vmem>>, vector<64x8xf32>
    tpu.vector_store %arg5[%c0_5, %c0_6], %5 {strides = array<i32>} : memref<64x8xf32, #tpu.memory_space<vmem>>, vector<64x8xf32>,
    %c0_7 = arith.constant 0 : index
    %c0_8 = arith.constant 0 : index
    %7 = vector.load %arg3[%c0_7, %c0_8] : memref<128x128xf32, #tpu.memory_space<vmem>>, vector<128x128xf32>
    %cst_9 = arith.constant dense<0.000000e+00> : vector<64x128xf32>
    %8 = tpu.matmul %0, %7, %cst_9 {dimension_numbers = #tpu.dot_dimension_numbers<[1], [0], [0], [1], [0, 0, 1, 1], [], []>} : vector<64x128xf32>, vector<128x128xf32>, vector<64x128xf32> -> vector<64x128xf32>
    %c0_10 = arith.constant 0 : index
    %c0_11 = arith.constant 0 : index
    %9 = vector.load %arg4[%c0_10, %c0_11] : memref<1x128xf32, #tpu.memory_space<vmem>>, vector<1x128xf32>
    %10 = vector.broadcast %9 : vector<1x128xf32> to vector<64x128xf32>
    %11 = arith.addf %8, %10 : vector<64x128xf32>
    %c0_12 = arith.constant 0 : index
    %c0_13 = arith.constant 0 : index
    %12 = vector.load %arg6[%c0_12, %c0_13] : memref<64x128xf32, #tpu.memory_space<vmem>>, vector<64x128xf32>
    tpu.vector_store %arg6[%c0_12, %c0_13], %11 {strides = array<i32>} : memref<64x128xf32, #tpu.memory_space<vmem>>, vector<64x128xf32>,
    return
  }
}

module attributes {stable_mosaic.version = 11 : i64} {
  func.func @_linear_softmax_kernel(%arg0: memref<64x128xf32, #tpu.memory_space<vmem>>, %arg1: memref<128x256xf32, #tpu.memory_space<vmem>>, %arg2: memref<1x256xf32, #tpu.memory_space<vmem>>, %arg3: memref<64x256xf32, #tpu.memory_space<vmem>>) attributes {dimension_semantics = [], scalar_prefetch = 0 : i64, scratch_operands = 0 : i64, tpu.core_type = #tpu.core_type<tc>} {
    %c0 = arith.constant 0 : index
    %c0_0 = arith.constant 0 : index
    %0 = vector.load %arg0[%c0, %c0_0] : memref<64x128xf32, #tpu.memory_space<vmem>>, vector<64x128xf32>
    %c0_1 = arith.constant 0 : index
    %c0_2 = arith.constant 0 : index
    %1 = vector.load %arg1[%c0_1, %c0_2] : memref<128x256xf32, #tpu.memory_space<vmem>>, vector<128x256xf32>
    %cst = arith.constant dense<0.000000e+00> : vector<64x256xf32>
    %2 = tpu.matmul %0, %1, %cst {dimension_numbers = #tpu.dot_dimension_numbers<[1], [0], [0], [1], [0, 0, 1, 1], [], []>} : vector<64x128xf32>, vector<128x256xf32>, vector<64x256xf32> -> vector<64x256xf32>
    %c0_3 = arith.constant 0 : index
    %c0_4 = arith.constant 0 : index
    %3 = vector.load %arg2[%c0_3, %c0_4] : memref<1x256xf32, #tpu.memory_space<vmem>>, vector<1x256xf32>
    %4 = vector.broadcast %3 : vector<1x256xf32> to vector<64x256xf32>
    %5 = arith.addf %2, %4 : vector<64x256xf32>
    %cst_5 = arith.constant dense<0xFF800000> : vector<64xf32>
    %6 = vector.multi_reduction <maximumf>, %5, %cst_5 [1] : vector<64x256xf32> to vector<64xf32>
    %7 = vector.shape_cast %6 : vector<64xf32> to vector<64x1xf32>
    %8 = vector.broadcast %7 : vector<64x1xf32> to vector<64x256xf32>
    %9 = arith.subf %5, %8 : vector<64x256xf32>
    %10 = math.exp %9 : vector<64x256xf32>
    %cst_6 = arith.constant dense<0.000000e+00> : vector<64xf32>
    %11 = vector.multi_reduction <add>, %10, %cst_6 [1] : vector<64x256xf32> to vector<64xf32>
    %12 = vector.shape_cast %11 : vector<64xf32> to vector<64x1xf32>
    %13 = tpu.reciprocal %12 {approx = true} : vector<64x1xf32> -> vector<64x1xf32>
    %14 = vector.broadcast %13 : vector<64x1xf32> to vector<64x256xf32>
    %15 = arith.mulf %10, %14 : vector<64x256xf32>
    %c0_7 = arith.constant 0 : index
    %c0_8 = arith.constant 0 : index
    %16 = vector.load %arg3[%c0_7, %c0_8] : memref<64x256xf32, #tpu.memory_space<vmem>>, vector<64x256xf32>
    tpu.vector_store %arg3[%c0_7, %c0_8], %15 {strides = array<i32>} : memref<64x256xf32, #tpu.memory_space<vmem>>, vector<64x256xf32>,
    return
  }
}

module attributes {stable_mosaic.version = 11 : i64} {
  func.func @_attn_decoder_recurrent_kernel(%arg0: memref<8x8x8xf32, #tpu.memory_space<vmem>>, %arg1: memref<8x8x128xf32, #tpu.memory_space<vmem>>, %arg2: memref<8x8x128xf32, #tpu.memory_space<vmem>>, %arg3: memref<2x8x128xf32, #tpu.memory_space<vmem>>, %arg4: memref<2x8x128xf32, #tpu.memory_space<vmem>>, %arg5: memref<128x8xf32, #tpu.memory_space<vmem>>, %arg6: memref<128x128xf32, #tpu.memory_space<vmem>>, %arg7: memref<2x128x512xf32, #tpu.memory_space<vmem>>, %arg8: memref<2x128x512xf32, #tpu.memory_space<vmem>>, %arg9: memref<2x1x512xf32, #tpu.memory_space<vmem>>, %arg10: memref<8x8x128xf32, #tpu.memory_space<vmem>>) attributes {dimension_semantics = [], scalar_prefetch = 0 : i64, scratch_operands = 0 : i64, tpu.core_type = #tpu.core_type<tc>} {
    %c0 = arith.constant 0 : index
    %c0_0 = arith.constant 0 : index
    %c0_1 = arith.constant 0 : index
    %0 = vector.load %arg3[%c0, %c0_0, %c0_1] : memref<2x8x128xf32, #tpu.memory_space<vmem>>, vector<1x8x128xf32>
    %1 = vector.shape_cast %0 : vector<1x8x128xf32> to vector<8x128xf32>
    %c1 = arith.constant 1 : index
    %c0_2 = arith.constant 0 : index
    %c0_3 = arith.constant 0 : index
    %2 = vector.load %arg3[%c1, %c0_2, %c0_3] : memref<2x8x128xf32, #tpu.memory_space<vmem>>, vector<1x8x128xf32>
    %3 = vector.shape_cast %2 : vector<1x8x128xf32> to vector<8x128xf32>
    %c0_4 = arith.constant 0 : index
    %c0_5 = arith.constant 0 : index
    %c0_6 = arith.constant 0 : index
    %4 = vector.load %arg4[%c0_4, %c0_5, %c0_6] : memref<2x8x128xf32, #tpu.memory_space<vmem>>, vector<1x8x128xf32>
    %5 = vector.shape_cast %4 : vector<1x8x128xf32> to vector<8x128xf32>
    %c1_7 = arith.constant 1 : index
    %c0_8 = arith.constant 0 : index
    %c0_9 = arith.constant 0 : index
    %6 = vector.load %arg4[%c1_7, %c0_8, %c0_9] : memref<2x8x128xf32, #tpu.memory_space<vmem>>, vector<1x8x128xf32>
    %7 = vector.shape_cast %6 : vector<1x8x128xf32> to vector<8x128xf32>
    %c0_i32 = arith.constant 0 : i32
    %c8_i32 = arith.constant 8 : i32
    %8 = arith.addi %c0_i32, %c8_i32 : i32
    %c1_i32 = arith.constant 1 : i32
    %9:4 = scf.for %arg11 = %c0_i32 to %8 step %c1_i32 iter_args(%arg12 = %1, %arg13 = %3, %arg14 = %5, %arg15 = %7) -> (vector<8x128xf32>, vector<8x128xf32>, vector<8x128xf32>, vector<8x128xf32>)  : i32 {
      %10 = arith.index_cast %arg11 : i32 to index
      %c0_11 = arith.constant 0 : index
      %c0_12 = arith.constant 0 : index
      %11 = vector.load %arg0[%10, %c0_11, %c0_12] : memref<8x8x8xf32, #tpu.memory_space<vmem>>, vector<1x8x8xf32>
      %12 = vector.shape_cast %11 : vector<1x8x8xf32> to vector<8x8xf32>
      %c0_13 = arith.constant 0 : index
      %c0_14 = arith.constant 0 : index
      %13 = vector.load %arg5[%c0_13, %c0_14] : memref<128x8xf32, #tpu.memory_space<vmem>>, vector<128x8xf32>
      %cst = arith.constant dense<0.000000e+00> : vector<8x8xf32>
      %14 = tpu.matmul %arg13, %13, %cst {dimension_numbers = #tpu.dot_dimension_numbers<[1], [0], [0], [1], [0, 0, 1, 1], [], []>} : vector<8x128xf32>, vector<128x8xf32>, vector<8x8xf32> -> vector<8x8xf32>
      %15 = arith.addf %12, %14 : vector<8x8xf32>
      %cst_15 = arith.constant dense<0xFF800000> : vector<8xf32>
      %16 = vector.multi_reduction <maximumf>, %15, %cst_15 [1] : vector<8x8xf32> to vector<8xf32>
      %17 = vector.shape_cast %16 : vector<8xf32> to vector<8x1xf32>
      %18 = vector.broadcast %17 : vector<8x1xf32> to vector<8x8xf32>
      %19 = arith.subf %15, %18 : vector<8x8xf32>
      %20 = math.exp %19 : vector<8x8xf32>
      %cst_16 = arith.constant dense<0.000000e+00> : vector<8xf32>
      %21 = vector.multi_reduction <add>, %20, %cst_16 [1] : vector<8x8xf32> to vector<8xf32>
      %22 = vector.shape_cast %21 : vector<8xf32> to vector<8x1xf32>
      %23 = tpu.reciprocal %22 {approx = true} : vector<8x1xf32> -> vector<8x1xf32>
      %24 = vector.broadcast %23 : vector<8x1xf32> to vector<8x8xf32>
      %25 = arith.mulf %20, %24 : vector<8x8xf32>
      %26 = vector.extract_strided_slice %25 {offsets = [0, 0], sizes = [8, 1], strides = [1, 1]} : vector<8x8xf32> to vector<8x1xf32>
      %c0_17 = arith.constant 0 : index
      %c0_18 = arith.constant 0 : index
      %c0_19 = arith.constant 0 : index
      %27 = vector.load %arg2[%c0_17, %c0_18, %c0_19] : memref<8x8x128xf32, #tpu.memory_space<vmem>>, vector<1x8x128xf32>
      %28 = vector.shape_cast %27 : vector<1x8x128xf32> to vector<8x128xf32>
      %29 = vector.broadcast %26 : vector<8x1xf32> to vector<8x128xf32>
      %30 = arith.mulf %29, %28 : vector<8x128xf32>
      %31 = vector.extract_strided_slice %25 {offsets = [0, 1], sizes = [8, 1], strides = [1, 1]} : vector<8x8xf32> to vector<8x1xf32>
      %c1_20 = arith.constant 1 : index
      %c0_21 = arith.constant 0 : index
      %c0_22 = arith.constant 0 : index
      %32 = vector.load %arg2[%c1_20, %c0_21, %c0_22] : memref<8x8x128xf32, #tpu.memory_space<vmem>>, vector<1x8x128xf32>
      %33 = vector.shape_cast %32 : vector<1x8x128xf32> to vector<8x128xf32>
      %34 = vector.broadcast %31 : vector<8x1xf32> to vector<8x128xf32>
      %35 = arith.mulf %34, %33 : vector<8x128xf32>
      %36 = arith.addf %30, %35 : vector<8x128xf32>
      %37 = vector.extract_strided_slice %25 {offsets = [0, 2], sizes = [8, 1], strides = [1, 1]} : vector<8x8xf32> to vector<8x1xf32>
      %c2 = arith.constant 2 : index
      %c0_23 = arith.constant 0 : index
      %c0_24 = arith.constant 0 : index
      %38 = vector.load %arg2[%c2, %c0_23, %c0_24] : memref<8x8x128xf32, #tpu.memory_space<vmem>>, vector<1x8x128xf32>
      %39 = vector.shape_cast %38 : vector<1x8x128xf32> to vector<8x128xf32>
      %40 = vector.broadcast %37 : vector<8x1xf32> to vector<8x128xf32>
      %41 = arith.mulf %40, %39 : vector<8x128xf32>
      %42 = arith.addf %36, %41 : vector<8x128xf32>
      %43 = vector.extract_strided_slice %25 {offsets = [0, 3], sizes = [8, 1], strides = [1, 1]} : vector<8x8xf32> to vector<8x1xf32>
      %c3 = arith.constant 3 : index
      %c0_25 = arith.constant 0 : index
      %c0_26 = arith.constant 0 : index
      %44 = vector.load %arg2[%c3, %c0_25, %c0_26] : memref<8x8x128xf32, #tpu.memory_space<vmem>>, vector<1x8x128xf32>
      %45 = vector.shape_cast %44 : vector<1x8x128xf32> to vector<8x128xf32>
      %46 = vector.broadcast %43 : vector<8x1xf32> to vector<8x128xf32>
      %47 = arith.mulf %46, %45 : vector<8x128xf32>
      %48 = arith.addf %42, %47 : vector<8x128xf32>
      %49 = vector.extract_strided_slice %25 {offsets = [0, 4], sizes = [8, 1], strides = [1, 1]} : vector<8x8xf32> to vector<8x1xf32>
      %c4 = arith.constant 4 : index
      %c0_27 = arith.constant 0 : index
      %c0_28 = arith.constant 0 : index
      %50 = vector.load %arg2[%c4, %c0_27, %c0_28] : memref<8x8x128xf32, #tpu.memory_space<vmem>>, vector<1x8x128xf32>
      %51 = vector.shape_cast %50 : vector<1x8x128xf32> to vector<8x128xf32>
      %52 = vector.broadcast %49 : vector<8x1xf32> to vector<8x128xf32>
      %53 = arith.mulf %52, %51 : vector<8x128xf32>
      %54 = arith.addf %48, %53 : vector<8x128xf32>
      %55 = vector.extract_strided_slice %25 {offsets = [0, 5], sizes = [8, 1], strides = [1, 1]} : vector<8x8xf32> to vector<8x1xf32>
      %c5 = arith.constant 5 : index
      %c0_29 = arith.constant 0 : index
      %c0_30 = arith.constant 0 : index
      %56 = vector.load %arg2[%c5, %c0_29, %c0_30] : memref<8x8x128xf32, #tpu.memory_space<vmem>>, vector<1x8x128xf32>
      %57 = vector.shape_cast %56 : vector<1x8x128xf32> to vector<8x128xf32>
      %58 = vector.broadcast %55 : vector<8x1xf32> to vector<8x128xf32>
      %59 = arith.mulf %58, %57 : vector<8x128xf32>
      %60 = arith.addf %54, %59 : vector<8x128xf32>
      %61 = vector.extract_strided_slice %25 {offsets = [0, 6], sizes = [8, 1], strides = [1, 1]} : vector<8x8xf32> to vector<8x1xf32>
      %c6 = arith.constant 6 : index
      %c0_31 = arith.constant 0 : index
      %c0_32 = arith.constant 0 : index
      %62 = vector.load %arg2[%c6, %c0_31, %c0_32] : memref<8x8x128xf32, #tpu.memory_space<vmem>>, vector<1x8x128xf32>
      %63 = vector.shape_cast %62 : vector<1x8x128xf32> to vector<8x128xf32>
      %64 = vector.broadcast %61 : vector<8x1xf32> to vector<8x128xf32>
      %65 = arith.mulf %64, %63 : vector<8x128xf32>
      %66 = arith.addf %60, %65 : vector<8x128xf32>
      %67 = vector.extract_strided_slice %25 {offsets = [0, 7], sizes = [8, 1], strides = [1, 1]} : vector<8x8xf32> to vector<8x1xf32>
      %c7 = arith.constant 7 : index
      %c0_33 = arith.constant 0 : index
      %c0_34 = arith.constant 0 : index
      %68 = vector.load %arg2[%c7, %c0_33, %c0_34] : memref<8x8x128xf32, #tpu.memory_space<vmem>>, vector<1x8x128xf32>
      %69 = vector.shape_cast %68 : vector<1x8x128xf32> to vector<8x128xf32>
      %70 = vector.broadcast %67 : vector<8x1xf32> to vector<8x128xf32>
      %71 = arith.mulf %70, %69 : vector<8x128xf32>
      %72 = arith.addf %66, %71 : vector<8x128xf32>
      %73 = arith.index_cast %arg11 : i32 to index
      %c0_35 = arith.constant 0 : index
      %c0_36 = arith.constant 0 : index
      %74 = vector.load %arg1[%73, %c0_35, %c0_36] : memref<8x8x128xf32, #tpu.memory_space<vmem>>, vector<1x8x128xf32>
      %75 = vector.shape_cast %74 : vector<1x8x128xf32> to vector<8x128xf32>
      %c0_37 = arith.constant 0 : index
      %c0_38 = arith.constant 0 : index
      %76 = vector.load %arg6[%c0_37, %c0_38] : memref<128x128xf32, #tpu.memory_space<vmem>>, vector<128x128xf32>
      %cst_39 = arith.constant dense<0.000000e+00> : vector<8x128xf32>
      %77 = tpu.matmul %72, %76, %cst_39 {dimension_numbers = #tpu.dot_dimension_numbers<[1], [0], [0], [1], [0, 0, 1, 1], [], []>} : vector<8x128xf32>, vector<128x128xf32>, vector<8x128xf32> -> vector<8x128xf32>
      %78 = arith.addf %75, %77 : vector<8x128xf32>
      %cst_40 = arith.constant 0.000000e+00 : f32
      %79 = vector.broadcast %cst_40 : f32 to vector<8x128xf32>
      %80 = arith.maximumf %78, %79 : vector<8x128xf32>
      %c0_41 = arith.constant 0 : index
      %c0_42 = arith.constant 0 : index
      %c0_43 = arith.constant 0 : index
      %81 = vector.load %arg7[%c0_41, %c0_42, %c0_43] : memref<2x128x512xf32, #tpu.memory_space<vmem>>, vector<1x128x512xf32>
      %82 = vector.shape_cast %81 : vector<1x128x512xf32> to vector<128x512xf32>
      %c0_44 = arith.constant 0 : index
      %c0_45 = arith.constant 0 : index
      %c0_46 = arith.constant 0 : index
      %83 = vector.load %arg8[%c0_44, %c0_45, %c0_46] : memref<2x128x512xf32, #tpu.memory_space<vmem>>, vector<1x128x512xf32>
      %84 = vector.shape_cast %83 : vector<1x128x512xf32> to vector<128x512xf32>
      %c0_47 = arith.constant 0 : index
      %c0_48 = arith.constant 0 : index
      %c0_49 = arith.constant 0 : index
      %85 = vector.load %arg9[%c0_47, %c0_48, %c0_49] : memref<2x1x512xf32, #tpu.memory_space<vmem>>, vector<1x1x512xf32>
      %86 = vector.shape_cast %85 : vector<1x1x512xf32> to vector<1x512xf32>
      %cst_50 = arith.constant dense<0.000000e+00> : vector<8x512xf32>
      %87 = tpu.matmul %80, %82, %cst_50 {dimension_numbers = #tpu.dot_dimension_numbers<[1], [0], [0], [1], [0, 0, 1, 1], [], []>} : vector<8x128xf32>, vector<128x512xf32>, vector<8x512xf32> -> vector<8x512xf32>
      %cst_51 = arith.constant dense<0.000000e+00> : vector<8x512xf32>
      %88 = tpu.matmul %arg12, %84, %cst_51 {dimension_numbers = #tpu.dot_dimension_numbers<[1], [0], [0], [1], [0, 0, 1, 1], [], []>} : vector<8x128xf32>, vector<128x512xf32>, vector<8x512xf32> -> vector<8x512xf32>
      %89 = arith.addf %87, %88 : vector<8x512xf32>
      %90 = vector.broadcast %86 : vector<1x512xf32> to vector<8x512xf32>
      %91 = arith.addf %89, %90 : vector<8x512xf32>
      %92 = vector.extract_strided_slice %91 {offsets = [0, 0], sizes = [8, 384], strides = [1, 1]} : vector<8x512xf32> to vector<8x384xf32>
      %93 = arith.negf %92 : vector<8x384xf32>
      %94 = math.exp %93 : vector<8x384xf32>
      %cst_52 = arith.constant 1.000000e+00 : f32
      %95 = vector.broadcast %cst_52 : f32 to vector<8x384xf32>
      %96 = arith.addf %95, %94 : vector<8x384xf32>
      %97 = arith.divf %95, %96 : vector<8x384xf32>
      %98 = vector.extract_strided_slice %91 {offsets = [0, 384], sizes = [8, 128], strides = [1, 1]} : vector<8x512xf32> to vector<8x128xf32>
      %99 = math.tanh %98 : vector<8x128xf32>
      %100 = vector.extract_strided_slice %97 {offsets = [0, 0], sizes = [8, 128], strides = [1, 1]} : vector<8x384xf32> to vector<8x128xf32>
      %101 = vector.extract_strided_slice %97 {offsets = [0, 128], sizes = [8, 128], strides = [1, 1]} : vector<8x384xf32> to vector<8x128xf32>
      %102 = vector.extract_strided_slice %97 {offsets = [0, 256], sizes = [8, 128], strides = [1, 1]} : vector<8x384xf32> to vector<8x128xf32>
      %103 = arith.mulf %101, %arg14 : vector<8x128xf32>
      %104 = arith.mulf %100, %99 : vector<8x128xf32>
      %105 = arith.addf %103, %104 : vector<8x128xf32>
      %106 = math.tanh %105 : vector<8x128xf32>
      %107 = arith.mulf %102, %106 : vector<8x128xf32>
      %c1_53 = arith.constant 1 : index
      %c0_54 = arith.constant 0 : index
      %c0_55 = arith.constant 0 : index
      %108 = vector.load %arg7[%c1_53, %c0_54, %c0_55] : memref<2x128x512xf32, #tpu.memory_space<vmem>>, vector<1x128x512xf32>
      %109 = vector.shape_cast %108 : vector<1x128x512xf32> to vector<128x512xf32>
      %c1_56 = arith.constant 1 : index
      %c0_57 = arith.constant 0 : index
      %c0_58 = arith.constant 0 : index
      %110 = vector.load %arg8[%c1_56, %c0_57, %c0_58] : memref<2x128x512xf32, #tpu.memory_space<vmem>>, vector<1x128x512xf32>
      %111 = vector.shape_cast %110 : vector<1x128x512xf32> to vector<128x512xf32>
      %c1_59 = arith.constant 1 : index
      %c0_60 = arith.constant 0 : index
      %c0_61 = arith.constant 0 : index
      %112 = vector.load %arg9[%c1_59, %c0_60, %c0_61] : memref<2x1x512xf32, #tpu.memory_space<vmem>>, vector<1x1x512xf32>
      %113 = vector.shape_cast %112 : vector<1x1x512xf32> to vector<1x512xf32>
      %cst_62 = arith.constant dense<0.000000e+00> : vector<8x512xf32>
      %114 = tpu.matmul %107, %109, %cst_62 {dimension_numbers = #tpu.dot_dimension_numbers<[1], [0], [0], [1], [0, 0, 1, 1], [], []>} : vector<8x128xf32>, vector<128x512xf32>, vector<8x512xf32> -> vector<8x512xf32>
      %cst_63 = arith.constant dense<0.000000e+00> : vector<8x512xf32>
      %115 = tpu.matmul %arg13, %111, %cst_63 {dimension_numbers = #tpu.dot_dimension_numbers<[1], [0], [0], [1], [0, 0, 1, 1], [], []>} : vector<8x128xf32>, vector<128x512xf32>, vector<8x512xf32> -> vector<8x512xf32>
      %116 = arith.addf %114, %115 : vector<8x512xf32>
      %117 = vector.broadcast %113 : vector<1x512xf32> to vector<8x512xf32>
      %118 = arith.addf %116, %117 : vector<8x512xf32>
      %119 = vector.extract_strided_slice %118 {offsets = [0, 0], sizes = [8, 384], strides = [1, 1]} : vector<8x512xf32> to vector<8x384xf32>
      %120 = arith.negf %119 : vector<8x384xf32>
      %121 = math.exp %120 : vector<8x384xf32>
      %cst_64 = arith.constant 1.000000e+00 : f32
      %122 = vector.broadcast %cst_64 : f32 to vector<8x384xf32>
      %123 = arith.addf %122, %121 : vector<8x384xf32>
      %124 = arith.divf %122, %123 : vector<8x384xf32>
      %125 = vector.extract_strided_slice %118 {offsets = [0, 384], sizes = [8, 128], strides = [1, 1]} : vector<8x512xf32> to vector<8x128xf32>
      %126 = math.tanh %125 : vector<8x128xf32>
      %127 = vector.extract_strided_slice %124 {offsets = [0, 0], sizes = [8, 128], strides = [1, 1]} : vector<8x384xf32> to vector<8x128xf32>
      %128 = vector.extract_strided_slice %124 {offsets = [0, 128], sizes = [8, 128], strides = [1, 1]} : vector<8x384xf32> to vector<8x128xf32>
      %129 = vector.extract_strided_slice %124 {offsets = [0, 256], sizes = [8, 128], strides = [1, 1]} : vector<8x384xf32> to vector<8x128xf32>
      %130 = arith.mulf %128, %arg15 : vector<8x128xf32>
      %131 = arith.mulf %127, %126 : vector<8x128xf32>
      %132 = arith.addf %130, %131 : vector<8x128xf32>
      %133 = math.tanh %132 : vector<8x128xf32>
      %134 = arith.mulf %129, %133 : vector<8x128xf32>
      %135 = arith.index_cast %arg11 : i32 to index
      %c0_65 = arith.constant 0 : index
      %c0_66 = arith.constant 0 : index
      %136 = vector.load %arg10[%135, %c0_65, %c0_66] : memref<8x8x128xf32, #tpu.memory_space<vmem>>, vector<1x8x128xf32>
      %137 = vector.shape_cast %136 : vector<1x8x128xf32> to vector<8x128xf32>
      %138 = vector.shape_cast %134 : vector<8x128xf32> to vector<1x8x128xf32>
      tpu.vector_store %arg10[%135, %c0_65, %c0_66], %138 {strides = array<i32>} : memref<8x8x128xf32, #tpu.memory_space<vmem>>, vector<1x8x128xf32>,
      scf.yield %107, %134, %105, %132 : vector<8x128xf32>, vector<8x128xf32>, vector<8x128xf32>, vector<8x128xf32>
    }
    %c8_i32_10 = arith.constant 8 : i32
    return
  }
}

</mosaic_0001>

<llo_original>
// kernel: encoder_attn_decoder_forward.7
$region0: #{encoder_attn_decoder_forward.7}
  #allocation0 [shape = 'u32[]', space=smem, size = 0x4, offset = 0x4, fixed_abs, tag = 'smem constant byte address 0x4 - core index']
  #allocation1 [shape = 'u32[72,128]{1,0:T(1,128)}', space=vmem, size = 0x9000, scoped, tag = 'internal scratch']
  %s0 = inlined_call_operand.vmem [shape: f32[64,128], index: 0, kind: input, shape index: {}]
  %s1 = inlined_call_operand.vmem [shape: f32[128,256], index: 1, kind: input, shape index: {}]
  %s2 = inlined_call_operand.vmem [shape: f32[1,256], index: 2, kind: input, shape index: {}]
  %s3 = inlined_call_operand.vmem [shape: f32[64,256], index: 3, kind: output, shape index: {}]
  %s4 = sld [smem:[#allocation0]]
  $region22: #{encoder_attn_decoder_forward.7} parent=0
    _
  %s6 = ssub.s32 1, %s4
  %s7 = scalar_select 0, %s6, %s4
  // Predicated region
  $region2: #{encoder_attn_decoder_forward.7} parent=0 // pred_check
    _
  $region3: #{encoder_attn_decoder_forward.7} parent=0 // pred_check_branch
    %9 = sbr.rel (0) target = $region5
  $region4: #{encoder_attn_decoder_forward.7} parent=0 // pred_region
    _
  $region5: #{encoder_attn_decoder_forward.7} parent=0 // pred_fallthru
    _
  // Predicated region
  $region6: #{encoder_attn_decoder_forward.7} parent=0 // pred_check
    _
  $region7: #{encoder_attn_decoder_forward.7} parent=0 // pred_check_branch
    %11 = sbr.rel (0) target = $region9
  $region8: #{encoder_attn_decoder_forward.7} parent=0 // pred_region
    _
  $region9: #{encoder_attn_decoder_forward.7} parent=0 // pred_fallthru
    _
  // Predicated region
  $region10: #{encoder_attn_decoder_forward.7} parent=0 // pred_check
    _
  $region11: #{encoder_attn_decoder_forward.7} parent=0 // pred_check_branch
    %13 = sbr.rel (0) target = $region13
  $region12: #{encoder_attn_decoder_forward.7} parent=0 // pred_region
    _
  $region13: #{encoder_attn_decoder_forward.7} parent=0 // pred_fallthru
    _
  %v14 = vld [vmem:[%s0] sm:$0xff]
  %v15 = vld [vmem:[%s0 + $0x8] sm:$0xff]
  %v16 = vld [vmem:[%s0 + $0x10] sm:$0xff]
  %v17 = vld [vmem:[%s0 + $0x18] sm:$0xff]
  %v18 = vld [vmem:[%s0 + $0x20] sm:$0xff]
  %v19 = vld [vmem:[%s0 + $0x28] sm:$0xff]
  %v20 = vld [vmem:[%s0 + $0x30] sm:$0xff]
  %v21 = vld [vmem:[%s0 + $0x38] sm:$0xff]
  %v22 = vld [vmem:[%s1] sm:$0xff]
  %v23 = vld [vmem:[%s1 + $0x8] sm:$0xff]
  %v24 = vld [vmem:[%s1 + $0x10] sm:$0xff]
  %v25 = vld [vmem:[%s1 + $0x18] sm:$0xff]
  %v26 = vld [vmem:[%s1 + $0x20] sm:$0xff]
  %v27 = vld [vmem:[%s1 + $0x28] sm:$0xff]
  %v28 = vld [vmem:[%s1 + $0x30] sm:$0xff]
  %v29 = vld [vmem:[%s1 + $0x38] sm:$0xff]
  %v30 = vld [vmem:[%s1 + $0x40] sm:$0xff]
  %v31 = vld [vmem:[%s1 + $0x48] sm:$0xff]
  %v32 = vld [vmem:[%s1 + $0x50] sm:$0xff]
  %v33 = vld [vmem:[%s1 + $0x58] sm:$0xff]
  %v34 = vld [vmem:[%s1 + $0x60] sm:$0xff]
  %v35 = vld [vmem:[%s1 + $0x68] sm:$0xff]
  %v36 = vld [vmem:[%s1 + $0x70] sm:$0xff]
  %v37 = vld [vmem:[%s1 + $0x78] sm:$0xff]
  %v38 = vld [vmem:[%s1 + $0x80] sm:$0xff]
  %v39 = vld [vmem:[%s1 + $0x88] sm:$0xff]
  %v40 = vld [vmem:[%s1 + $0x90] sm:$0xff]
  %v41 = vld [vmem:[%s1 + $0x98] sm:$0xff]
  %v42 = vld [vmem:[%s1 + $0xa0] sm:$0xff]
  %v43 = vld [vmem:[%s1 + $0xa8] sm:$0xff]
  %v44 = vld [vmem:[%s1 + $0xb0] sm:$0xff]
  %v45 = vld [vmem:[%s1 + $0xb8] sm:$0xff]
  %v46 = vld [vmem:[%s1 + $0xc0] sm:$0xff]
  %v47 = vld [vmem:[%s1 + $0xc8] sm:$0xff]
  %v48 = vld [vmem:[%s1 + $0xd0] sm:$0xff]
  %v49 = vld [vmem:[%s1 + $0xd8] sm:$0xff]
  %v50 = vld [vmem:[%s1 + $0xe0] sm:$0xff]
  %v51 = vld [vmem:[%s1 + $0xe8] sm:$0xff]
  %v52 = vld [vmem:[%s1 + $0xf0] sm:$0xff]
  %v53 = vld [vmem:[%s1 + $0xf8] sm:$0xff]
  %v54 = vld [vmem:[%s2] sm:$0x3]
  %v56 = vperm.slane %v54, 0
  %v57 = vperm.slane %v54, 1
  %60 = vmatpush.msra.mxu0 %v52
  %61 = vmatpush.msra.mxu0 %v50
  %62 = vmatpush.msra.mxu0 %v48
  %63 = vmatpush.msra.mxu0 %v46
  %64 = vmatpush.msra.mxu0 %v44
  %65 = vmatpush.msra.mxu0 %v42
  %66 = vmatpush.msra.mxu0 %v40
  %67 = vmatpush.msra.mxu0 %v38
  %68 = vmatpush.msra.mxu0 %v36
  %69 = vmatpush.msra.mxu0 %v34
  %70 = vmatpush.msra.mxu0 %v32
  %71 = vmatpush.msra.mxu0 %v30
  %72 = vmatpush.msra.mxu0 %v28
  %73 = vmatpush.msra.mxu0 %v26
  %74 = vmatpush.msra.mxu0 %v24
  %75 = vmatpush.msra.mxu0 %v22
  %76 = vmatmul.f32.gmra.mxu0 %v14
  %v77 = vpop.f32.mrf.mxu0
  %v78 = vadd.f32 %v56, %v77
  %79 = vmatmul.f32.gmra.mxu0 %v15
  %v80 = vpop.f32.mrf.mxu0
  %v81 = vadd.f32 %v56, %v80
  %82 = vmatmul.f32.gmra.mxu0 %v16
  %v83 = vpop.f32.mrf.mxu0
  %v84 = vadd.f32 %v56, %v83
  %85 = vmatmul.f32.gmra.mxu0 %v17
  %v86 = vpop.f32.mrf.mxu0
  %v87 = vadd.f32 %v56, %v86
  %88 = vmatmul.f32.gmra.mxu0 %v18
  %v89 = vpop.f32.mrf.mxu0
  %v90 = vadd.f32 %v56, %v89
  %91 = vmatmul.f32.gmra.mxu0 %v19
  %v92 = vpop.f32.mrf.mxu0
  %v93 = vadd.f32 %v56, %v92
  %94 = vmatmul.f32.gmra.mxu0 %v20
  %v95 = vpop.f32.mrf.mxu0
  %v96 = vadd.f32 %v56, %v95
  %97 = vmatmul.f32.gmra.mxu0 %v21
  %v98 = vpop.f32.mrf.mxu0
  %v99 = vadd.f32 %v56, %v98
  %100 = vdwg.mxu0
  %101 = vmatpush.msra.mxu0 %v53
  %102 = vmatpush.msra.mxu0 %v51
  %103 = vmatpush.msra.mxu0 %v49
  %104 = vmatpush.msra.mxu0 %v47
  %105 = vmatpush.msra.mxu0 %v45
  %106 = vmatpush.msra.mxu0 %v43
  %107 = vmatpush.msra.mxu0 %v41
  %108 = vmatpush.msra.mxu0 %v39
  %109 = vmatpush.msra.mxu0 %v37
  %110 = vmatpush.msra.mxu0 %v35
  %111 = vmatpush.msra.mxu0 %v33
  %112 = vmatpush.msra.mxu0 %v31
  %113 = vmatpush.msra.mxu0 %v29
  %114 = vmatpush.msra.mxu0 %v27
  %115 = vmatpush.msra.mxu0 %v25
  %116 = vmatpush.msra.mxu0 %v23
  %117 = vmatmul.f32.gmra.mxu0 %v14
  %v118 = vpop.f32.mrf.mxu0
  %v119 = vadd.f32 %v57, %v118
  %120 = vmatmul.f32.gmra.mxu0 %v15
  %v121 = vpop.f32.mrf.mxu0
  %v122 = vadd.f32 %v57, %v121
  %123 = vmatmul.f32.gmra.mxu0 %v16
  %v124 = vpop.f32.mrf.mxu0
  %v125 = vadd.f32 %v57, %v124
  %126 = vmatmul.f32.gmra.mxu0 %v17
  %v127 = vpop.f32.mrf.mxu0
  %v128 = vadd.f32 %v57, %v127
  %129 = vmatmul.f32.gmra.mxu0 %v18
  %v130 = vpop.f32.mrf.mxu0
  %v131 = vadd.f32 %v57, %v130
  %132 = vmatmul.f32.gmra.mxu0 %v19
  %v133 = vpop.f32.mrf.mxu0
  %v134 = vadd.f32 %v57, %v133
  %135 = vmatmul.f32.gmra.mxu0 %v20
  %v136 = vpop.f32.mrf.mxu0
  %v137 = vadd.f32 %v57, %v136
  %138 = vmatmul.f32.gmra.mxu0 %v21
  %v139 = vpop.f32.mrf.mxu0
  %v140 = vadd.f32 %v57, %v139
  %141 = vdwg.mxu0
  %v142 = vmax.f32 %v78, %v119
  %143 = vmax.xlane.f32.xlu0 %v142
  %v144 = vpop.xlane.xlu0 %143
  %v145 = vmax.f32 %v81, %v122
  %146 = vmax.xlane.f32.xlu0 %v145
  %v147 = vpop.xlane.xlu0 %146
  %v148 = vmax.f32 %v84, %v125
  %149 = vmax.xlane.f32.xlu0 %v148
  %v150 = vpop.xlane.xlu0 %149
  %v151 = vmax.f32 %v87, %v128
  %152 = vmax.xlane.f32.xlu0 %v151
  %v153 = vpop.xlane.xlu0 %152
  %v154 = vmax.f32 %v90, %v131
  %155 = vmax.xlane.f32.xlu0 %v154
  %v156 = vpop.xlane.xlu0 %155
  %v157 = vmax.f32 %v93, %v134
  %158 = vmax.xlane.f32.xlu0 %v157
  %v159 = vpop.xlane.xlu0 %158
  %v160 = vmax.f32 %v96, %v137
  %161 = vmax.xlane.f32.xlu0 %v160
  %v162 = vpop.xlane.xlu0 %161
  %v163 = vmax.f32 %v99, %v140
  %164 = vmax.xlane.f32.xlu0 %v163
  %v165 = vpop.xlane.xlu0 %164
  %v166 = vsub.f32 %v78, %v144
  %v167 = vsub.f32 %v119, %v144
  %v168 = vsub.f32 %v81, %v147
  %v169 = vsub.f32 %v122, %v147
  %v170 = vsub.f32 %v84, %v150
  %v171 = vsub.f32 %v125, %v150
  %v172 = vsub.f32 %v87, %v153
  %v173 = vsub.f32 %v128, %v153
  %v174 = vsub.f32 %v90, %v156
  %v175 = vsub.f32 %v131, %v156
  %v176 = vsub.f32 %v93, %v159
  %v177 = vsub.f32 %v134, %v159
  %v178 = vsub.f32 %v96, %v162
  %v179 = vsub.f32 %v137, %v162
  %v180 = vsub.f32 %v99, %v165
  %v181 = vsub.f32 %v140, %v165
  %v182 = vmul.f32 %v166, 1.442695
  %v183 = vpow.pop %v182
  %v184 = vmul.f32 %v167, 1.442695
  %v185 = vpow.pop %v184
  %v186 = vmul.f32 %v168, 1.442695
  %v187 = vpow.pop %v186
  %v188 = vmul.f32 %v169, 1.442695
  %v189 = vpow.pop %v188
  %v190 = vmul.f32 %v170, 1.442695
  %v191 = vpow.pop %v190
  %v192 = vmul.f32 %v171, 1.442695
  %v193 = vpow.pop %v192
  %v194 = vmul.f32 %v172, 1.442695
  %v195 = vpow.pop %v194
  %v196 = vmul.f32 %v173, 1.442695
  %v197 = vpow.pop %v196
  %v198 = vmul.f32 %v174, 1.442695
  %v199 = vpow.pop %v198
  %v200 = vmul.f32 %v175, 1.442695
  %v201 = vpow.pop %v200
  %v202 = vmul.f32 %v176, 1.442695
  %v203 = vpow.pop %v202
  %v204 = vmul.f32 %v177, 1.442695
  %v205 = vpow.pop %v204
  %v206 = vmul.f32 %v178, 1.442695
  %v207 = vpow.pop %v206
  %v208 = vmul.f32 %v179, 1.442695
  %v209 = vpow.pop %v208
  %v210 = vmul.f32 %v180, 1.442695
  %v211 = vpow.pop %v210
  %v212 = vmul.f32 %v181, 1.442695
  %v213 = vpow.pop %v212
  %v214 = vadd.f32 %v183, %v185
  %215 = vadd.xlane.f32.xlu0 %v214
  %v216 = vpop.xlane.xlu0 %215
  %v217 = vadd.f32 %v187, %v189
  %218 = vadd.xlane.f32.xlu0 %v217
  %v219 = vpop.xlane.xlu0 %218
  %v220 = vadd.f32 %v191, %v193
  %221 = vadd.xlane.f32.xlu0 %v220
  %v222 = vpop.xlane.xlu0 %221
  %v223 = vadd.f32 %v195, %v197
  %224 = vadd.xlane.f32.xlu0 %v223
  %v225 = vpop.xlane.xlu0 %224
  %v226 = vadd.f32 %v199, %v201
  %227 = vadd.xlane.f32.xlu0 %v226
  %v228 = vpop.xlane.xlu0 %227
  %v229 = vadd.f32 %v203, %v205
  %230 = vadd.xlane.f32.xlu0 %v229
  %v231 = vpop.xlane.xlu0 %230
  %v232 = vadd.f32 %v207, %v209
  %233 = vadd.xlane.f32.xlu0 %v232
  %v234 = vpop.xlane.xlu0 %233
  %v235 = vadd.f32 %v211, %v213
  %236 = vadd.xlane.f32.xlu0 %v235
  %v237 = vpop.xlane.xlu0 %236
  %v238 = vrcp.pop %v216
  %v239 = vrcp.pop %v219
  %v240 = vrcp.pop %v222
  %v241 = vrcp.pop %v225
  %v242 = vrcp.pop %v228
  %v243 = vrcp.pop %v231
  %v244 = vrcp.pop %v234
  %v245 = vrcp.pop %v237
  %v246 = vmul.f32 %v183, %v238
  %v247 = vmul.f32 %v185, %v238
  %v248 = vmul.f32 %v187, %v239
  %v249 = vmul.f32 %v189, %v239
  %v250 = vmul.f32 %v191, %v240
  %v251 = vmul.f32 %v193, %v240
  %v252 = vmul.f32 %v195, %v241
  %v253 = vmul.f32 %v197, %v241
  %v254 = vmul.f32 %v199, %v242
  %v255 = vmul.f32 %v201, %v242
  %v256 = vmul.f32 %v203, %v243
  %v257 = vmul.f32 %v205, %v243
  %v258 = vmul.f32 %v207, %v244
  %v259 = vmul.f32 %v209, %v244
  %v260 = vmul.f32 %v211, %v245
  %v261 = vmul.f32 %v213, %v245
  %262 = vst [vmem:[%s3] sm:$0xff] %v246
  %263 = vst [vmem:[%s3 + $0x8] sm:$0xff] %v247
  %264 = vst [vmem:[%s3 + $0x10] sm:$0xff] %v248
  %265 = vst [vmem:[%s3 + $0x18] sm:$0xff] %v249
  %266 = vst [vmem:[%s3 + $0x20] sm:$0xff] %v250
  %267 = vst [vmem:[%s3 + $0x28] sm:$0xff] %v251
  %268 = vst [vmem:[%s3 + $0x30] sm:$0xff] %v252
  %269 = vst [vmem:[%s3 + $0x38] sm:$0xff] %v253
  %270 = vst [vmem:[%s3 + $0x40] sm:$0xff] %v254
  %271 = vst [vmem:[%s3 + $0x48] sm:$0xff] %v255
  %272 = vst [vmem:[%s3 + $0x50] sm:$0xff] %v256
  %273 = vst [vmem:[%s3 + $0x58] sm:$0xff] %v257
  %274 = vst [vmem:[%s3 + $0x60] sm:$0xff] %v258
  %275 = vst [vmem:[%s3 + $0x68] sm:$0xff] %v259
  %276 = vst [vmem:[%s3 + $0x70] sm:$0xff] %v260
  %277 = vst [vmem:[%s3 + $0x78] sm:$0xff] %v261
  // Predicated region
  $region14: #{encoder_attn_decoder_forward.7} parent=0 // pred_check
    _
  $region15: #{encoder_attn_decoder_forward.7} parent=0 // pred_check_branch
    %279 = sbr.rel (0) target = $region17
  $region16: #{encoder_attn_decoder_forward.7} parent=0 // pred_region
    _
  $region17: #{encoder_attn_decoder_forward.7} parent=0 // pred_fallthru
    _
  // Predicated region
  $region18: #{encoder_attn_decoder_forward.7} parent=0 // pred_check
    _
  $region19: #{encoder_attn_decoder_forward.7} parent=0 // pred_check_branch
    %281 = sbr.rel (0) target = $region21
  $region20: #{encoder_attn_decoder_forward.7} parent=0 // pred_region
    _
  $region21: #{encoder_attn_decoder_forward.7} parent=0 // pred_fallthru
    _

// kernel: encoder_attn_decoder_forward.5
$region0: #{encoder_attn_decoder_forward.5}
  #allocation0 [shape = 'u32[]', space=smem, size = 0x4, offset = 0x4, fixed_abs, tag = 'smem constant byte address 0x4 - core index']
  #allocation1 [shape = 'u32[72,128]{1,0:T(1,128)}', space=vmem, size = 0x9000, scoped, tag = 'internal scratch']
  %s0 = inlined_call_operand.vmem [shape: f32[64,128], index: 0, kind: input, shape index: {}]
  %s1 = inlined_call_operand.vmem [shape: f32[128,8], index: 1, kind: input, shape index: {}]
  %s2 = inlined_call_operand.vmem [shape: f32[1,8], index: 2, kind: input, shape index: {}]
  %s3 = inlined_call_operand.hbm [shape: f32[128,128], index: 3, kind: input, shape index: {}]
  %s4 = inlined_call_operand.vmem [shape: f32[1,128], index: 4, kind: input, shape index: {}]
  %s5 = inlined_call_operand.vmem [shape: f32[64,8], index: 5, kind: output, shape index: {0}]
  %s6 = inlined_call_operand.vmem [shape: f32[64,128], index: 6, kind: output, shape index: {1}]
  %7 = xla_tuple %s5, %s6
  %s8 = sld [smem:[#allocation0]]
  $region42: #{encoder_attn_decoder_forward.5} parent=0
    _
  %s10 = ssub.s32 1, %s8
  %s11 = scalar_select 0, %s10, %s8
  $region1: #{encoder_attn_decoder_forward.5} parent=0
    #allocation2 [shape = 'u8[65536]{0}', space=vmem, size = 0x10000, scoped, tag = 'input window, operand 3, single buffered']
    #allocation3 [shape = 's32[1]{0}', space=sflag, size = 0x4, scoped, tag = 'scoped memory for encoder_attn_decoder_forward.5']
    %12 = vsyncpa [#allocation3], 0
    // Predicated region
    $region2: #{encoder_attn_decoder_forward.5} parent=1 // pred_check
      _
    $region3: #{encoder_attn_decoder_forward.5} parent=1 // pred_check_branch
      %14 = sbr.rel (0) target = $region5
    $region4: #{encoder_attn_decoder_forward.5} parent=1 // pred_region
      _
    $region5: #{encoder_attn_decoder_forward.5} parent=1 // pred_fallthru
      _
    // Predicated region
    $region6: #{encoder_attn_decoder_forward.5} parent=1 // pred_check
      _
    $region7: #{encoder_attn_decoder_forward.5} parent=1 // pred_check_branch
      %16 = sbr.rel (0) target = $region9
    $region8: #{encoder_attn_decoder_forward.5} parent=1 // pred_region
      _
    $region9: #{encoder_attn_decoder_forward.5} parent=1 // pred_fallthru
      _
    // Predicated region
    $region10: #{encoder_attn_decoder_forward.5} parent=1 // pred_check
      _
    $region11: #{encoder_attn_decoder_forward.5} parent=1 // pred_check_branch
      %18 = sbr.rel (0) target = $region13
    $region12: #{encoder_attn_decoder_forward.5} parent=1 // pred_region
      _
    $region13: #{encoder_attn_decoder_forward.5} parent=1 // pred_fallthru
      _
    // Predicated region
    $region14: #{encoder_attn_decoder_forward.5} parent=1 // pred_check
      _
    $region15: #{encoder_attn_decoder_forward.5} parent=1 // pred_check_branch
      %20 = sbr.rel (0) target = $region17
    $region16: #{encoder_attn_decoder_forward.5} parent=1 // pred_region
      %22 = vsyncadd [#allocation3], 0
      %s23 = sshll.u32 %s3, 4
      %s24 = int_to_ptr.hbm [resolvable:$true] %s23
      %s25 = sshll.u32 [#allocation2], 4
      %s26 = int_to_ptr.vmem [resolvable:$true] %s25
      %31 = dma.hbm_to_vmem [thread:$0]  %s24, 2048, %s26, [#allocation3], 128, 128, 8
    $region17: #{encoder_attn_decoder_forward.5} parent=1 // pred_fallthru
      _
    // Predicated region
    $region18: #{encoder_attn_decoder_forward.5} parent=1 // pred_check
      _
    $region19: #{encoder_attn_decoder_forward.5} parent=1 // pred_check_branch
      %33 = sbr.rel (0) target = $region21
    $region20: #{encoder_attn_decoder_forward.5} parent=1 // pred_region
      _
    $region21: #{encoder_attn_decoder_forward.5} parent=1 // pred_fallthru
      _
    // Predicated region
    $region22: #{encoder_attn_decoder_forward.5} parent=1 // pred_check
      _
    $region23: #{encoder_attn_decoder_forward.5} parent=1 // pred_check_branch
      %35 = sbr.rel (0) target = $region25
    $region24: #{encoder_attn_decoder_forward.5} parent=1 // pred_region
      %37 = dma.done [#allocation3], 2048
    $region25: #{encoder_attn_decoder_forward.5} parent=1 // pred_fallthru
      _
    %v38 = vld [vmem:[%s0] sm:$0xff]
    %v39 = vld [vmem:[%s0 + $0x8] sm:$0xff]
    %v40 = vld [vmem:[%s0 + $0x10] sm:$0xff]
    %v41 = vld [vmem:[%s0 + $0x18] sm:$0xff]
    %v42 = vld [vmem:[%s0 + $0x20] sm:$0xff]
    %v43 = vld [vmem:[%s0 + $0x28] sm:$0xff]
    %v44 = vld [vmem:[%s0 + $0x30] sm:$0xff]
    %v45 = vld [vmem:[%s0 + $0x38] sm:$0xff]
    %v46 = vld [vmem:[%s1] sm:$0xff]
    %v47 = vld [vmem:[%s1 + $0x8] sm:$0xff]
    %v48 = vld [vmem:[%s1 + $0x10] sm:$0xff]
    %v49 = vld [vmem:[%s1 + $0x18] sm:$0xff]
    %v50 = vld [vmem:[%s1 + $0x20] sm:$0xff]
    %v51 = vld [vmem:[%s1 + $0x28] sm:$0xff]
    %v52 = vld [vmem:[%s1 + $0x30] sm:$0xff]
    %v53 = vld [vmem:[%s1 + $0x38] sm:$0xff]
    %v54 = vld [vmem:[%s1 + $0x40] sm:$0xff]
    %v55 = vld [vmem:[%s1 + $0x48] sm:$0xff]
    %v56 = vld [vmem:[%s1 + $0x50] sm:$0xff]
    %v57 = vld [vmem:[%s1 + $0x58] sm:$0xff]
    %v58 = vld [vmem:[%s1 + $0x60] sm:$0xff]
    %v59 = vld [vmem:[%s1 + $0x68] sm:$0xff]
    %v60 = vld [vmem:[%s1 + $0x70] sm:$0xff]
    %v61 = vld [vmem:[%s1 + $0x78] sm:$0xff]
    %v62 = vld [vmem:[%s2] sm:$0x1]
    %v64 = vperm.slane %v62, 0
    %66 = vmatpush.msra.mxu0 %v61
    %67 = vmatpush.msra.mxu0 %v60
    %68 = vmatpush.msra.mxu0 %v59
    %69 = vmatpush.msra.mxu0 %v58
    %70 = vmatpush.msra.mxu0 %v57
    %71 = vmatpush.msra.mxu0 %v56
    %72 = vmatpush.msra.mxu0 %v55
    %73 = vmatpush.msra.mxu0 %v54
    %74 = vmatpush.msra.mxu0 %v53
    %75 = vmatpush.msra.mxu0 %v52
    %76 = vmatpush.msra.mxu0 %v51
    %77 = vmatpush.msra.mxu0 %v50
    %78 = vmatpush.msra.mxu0 %v49
    %79 = vmatpush.msra.mxu0 %v48
    %80 = vmatpush.msra.mxu0 %v47
    %81 = vmatpush.msra.mxu0 %v46
    %82 = vmatmul.f32.gmra.mxu0 %v38
    %v83 = vpop.f32.mrf.mxu0
    %v84 = vadd.f32 %v64, %v83
    %85 = vmatmul.f32.gmra.mxu0 %v39
    %v86 = vpop.f32.mrf.mxu0
    %v87 = vadd.f32 %v64, %v86
    %88 = vmatmul.f32.gmra.mxu0 %v40
    %v89 = vpop.f32.mrf.mxu0
    %v90 = vadd.f32 %v64, %v89
    %91 = vmatmul.f32.gmra.mxu0 %v41
    %v92 = vpop.f32.mrf.mxu0
    %v93 = vadd.f32 %v64, %v92
    %94 = vmatmul.f32.gmra.mxu0 %v42
    %v95 = vpop.f32.mrf.mxu0
    %v96 = vadd.f32 %v64, %v95
    %97 = vmatmul.f32.gmra.mxu0 %v43
    %v98 = vpop.f32.mrf.mxu0
    %v99 = vadd.f32 %v64, %v98
    %100 = vmatmul.f32.gmra.mxu0 %v44
    %v101 = vpop.f32.mrf.mxu0
    %v102 = vadd.f32 %v64, %v101
    %103 = vmatmul.f32.gmra.mxu0 %v45
    %v104 = vpop.f32.mrf.mxu0
    %v105 = vadd.f32 %v64, %v104
    %106 = vdwg.mxu0
    %vm107 = vcmask 64512
    %108 = vst.msk [vmem:[%s5] sm:$0xff] %vm107, %v84
    %109 = vst.msk [vmem:[%s5 + $0x8] sm:$0xff] %vm107, %v87
    %110 = vst.msk [vmem:[%s5 + $0x10] sm:$0xff] %vm107, %v90
    %111 = vst.msk [vmem:[%s5 + $0x18] sm:$0xff] %vm107, %v93
    %112 = vst.msk [vmem:[%s5 + $0x20] sm:$0xff] %vm107, %v96
    %113 = vst.msk [vmem:[%s5 + $0x28] sm:$0xff] %vm107, %v99
    %114 = vst.msk [vmem:[%s5 + $0x30] sm:$0xff] %vm107, %v102
    %115 = vst.msk [vmem:[%s5 + $0x38] sm:$0xff] %vm107, %v105
    %v116 = vld [vmem:[#allocation2] sm:$0xff]
    %v117 = vld [vmem:[#allocation2 + $0x8] sm:$0xff]
    %v118 = vld [vmem:[#allocation2 + $0x10] sm:$0xff]
    %v119 = vld [vmem:[#allocation2 + $0x18] sm:$0xff]
    %v120 = vld [vmem:[#allocation2 + $0x20] sm:$0xff]
    %v121 = vld [vmem:[#allocation2 + $0x28] sm:$0xff]
    %v122 = vld [vmem:[#allocation2 + $0x30] sm:$0xff]
    %v123 = vld [vmem:[#allocation2 + $0x38] sm:$0xff]
    %v124 = vld [vmem:[#allocation2 + $0x40] sm:$0xff]
    %v125 = vld [vmem:[#allocation2 + $0x48] sm:$0xff]
    %v126 = vld [vmem:[#allocation2 + $0x50] sm:$0xff]
    %v127 = vld [vmem:[#allocation2 + $0x58] sm:$0xff]
    %v128 = vld [vmem:[#allocation2 + $0x60] sm:$0xff]
    %v129 = vld [vmem:[#allocation2 + $0x68] sm:$0xff]
    %v130 = vld [vmem:[#allocation2 + $0x70] sm:$0xff]
    %v131 = vld [vmem:[#allocation2 + $0x78] sm:$0xff]
    %v132 = vld [vmem:[%s4] sm:$0x1]
    %v134 = vperm.slane %v132, 0
    %136 = vmatpush.msra.mxu0 %v131
    %137 = vmatpush.msra.mxu0 %v130
    %138 = vmatpush.msra.mxu0 %v129
    %139 = vmatpush.msra.mxu0 %v128
    %140 = vmatpush.msra.mxu0 %v127
    %141 = vmatpush.msra.mxu0 %v126
    %142 = vmatpush.msra.mxu0 %v125
    %143 = vmatpush.msra.mxu0 %v124
    %144 = vmatpush.msra.mxu0 %v123
    %145 = vmatpush.msra.mxu0 %v122
    %146 = vmatpush.msra.mxu0 %v121
    %147 = vmatpush.msra.mxu0 %v120
    %148 = vmatpush.msra.mxu0 %v119
    %149 = vmatpush.msra.mxu0 %v118
    %150 = vmatpush.msra.mxu0 %v117
    %151 = vmatpush.msra.mxu0 %v116
    %152 = vmatmul.f32.gmra.mxu0 %v38
    %v153 = vpop.f32.mrf.mxu0
    %v154 = vadd.f32 %v134, %v153
    %155 = vmatmul.f32.gmra.mxu0 %v39
    %v156 = vpop.f32.mrf.mxu0
    %v157 = vadd.f32 %v134, %v156
    %158 = vmatmul.f32.gmra.mxu0 %v40
    %v159 = vpop.f32.mrf.mxu0
    %v160 = vadd.f32 %v134, %v159
    %161 = vmatmul.f32.gmra.mxu0 %v41
    %v162 = vpop.f32.mrf.mxu0
    %v163 = vadd.f32 %v134, %v162
    %164 = vmatmul.f32.gmra.mxu0 %v42
    %v165 = vpop.f32.mrf.mxu0
    %v166 = vadd.f32 %v134, %v165
    %167 = vmatmul.f32.gmra.mxu0 %v43
    %v168 = vpop.f32.mrf.mxu0
    %v169 = vadd.f32 %v134, %v168
    %170 = vmatmul.f32.gmra.mxu0 %v44
    %v171 = vpop.f32.mrf.mxu0
    %v172 = vadd.f32 %v134, %v171
    %173 = vmatmul.f32.gmra.mxu0 %v45
    %v174 = vpop.f32.mrf.mxu0
    %v175 = vadd.f32 %v134, %v174
    %176 = vdwg.mxu0
    %177 = vst [vmem:[%s6] sm:$0xff] %v154
    %178 = vst [vmem:[%s6 + $0x8] sm:$0xff] %v157
    %179 = vst [vmem:[%s6 + $0x10] sm:$0xff] %v160
    %180 = vst [vmem:[%s6 + $0x18] sm:$0xff] %v163
    %181 = vst [vmem:[%s6 + $0x20] sm:$0xff] %v166
    %182 = vst [vmem:[%s6 + $0x28] sm:$0xff] %v169
    %183 = vst [vmem:[%s6 + $0x30] sm:$0xff] %v172
    %184 = vst [vmem:[%s6 + $0x38] sm:$0xff] %v175
    // Predicated region
    $region26: #{encoder_attn_decoder_forward.5} parent=1 // pred_check
      _
    $region27: #{encoder_attn_decoder_forward.5} parent=1 // pred_check_branch
      %186 = sbr.rel (0) target = $region29
    $region28: #{encoder_attn_decoder_forward.5} parent=1 // pred_region
      _
    $region29: #{encoder_attn_decoder_forward.5} parent=1 // pred_fallthru
      _
    // Predicated region
    $region30: #{encoder_attn_decoder_forward.5} parent=1 // pred_check
      _
    $region31: #{encoder_attn_decoder_forward.5} parent=1 // pred_check_branch
      %188 = sbr.rel (0) target = $region33
    $region32: #{encoder_attn_decoder_forward.5} parent=1 // pred_region
      _
    $region33: #{encoder_attn_decoder_forward.5} parent=1 // pred_fallthru
      _
    // Predicated region
    $region34: #{encoder_attn_decoder_forward.5} parent=1 // pred_check
      _
    $region35: #{encoder_attn_decoder_forward.5} parent=1 // pred_check_branch
      %190 = sbr.rel (0) target = $region37
    $region36: #{encoder_attn_decoder_forward.5} parent=1 // pred_region
      _
    $region37: #{encoder_attn_decoder_forward.5} parent=1 // pred_fallthru
      _
    // Predicated region
    $region38: #{encoder_attn_decoder_forward.5} parent=1 // pred_check
      _
    $region39: #{encoder_attn_decoder_forward.5} parent=1 // pred_check_branch
      %192 = sbr.rel (0) target = $region41
    $region40: #{encoder_attn_decoder_forward.5} parent=1 // pred_region
      _
    $region41: #{encoder_attn_decoder_forward.5} parent=1 // pred_fallthru
      _
    %193 = vsyncpa [#allocation3], 1

// kernel: encoder_attn_decoder_forward.4
$region0: #{encoder_attn_decoder_forward.4}
  #allocation0 [shape = 'u32[]', space=smem, size = 0x4, offset = 0x4, fixed_abs, tag = 'smem constant byte address 0x4 - core index']
  #allocation1 [shape = 'u32[72,128]{1,0:T(1,128)}', space=vmem, size = 0x9000, scoped, tag = 'internal scratch']
  %s0 = inlined_call_operand.vmem [shape: f32[8,8,128], index: 0, kind: input, shape index: {}]
  %s1 = inlined_call_operand.vmem [shape: f32[128,512], index: 1, kind: input, shape index: {}]
  %s2 = inlined_call_operand.vmem [shape: f32[128,512], index: 2, kind: input, shape index: {}]
  %s3 = inlined_call_operand.vmem [shape: f32[1,512], index: 3, kind: input, shape index: {}]
  %s4 = inlined_call_operand.vmem [shape: f32[8,8,128], index: 4, kind: output, shape index: {}]
  %s5 = sld [smem:[#allocation0]]
  $region33: #{encoder_attn_decoder_forward.4} parent=0
    _
  %s7 = ssub.s32 1, %s5
  %s8 = scalar_select 0, %s7, %s5
  // Predicated region
  $region2: #{encoder_attn_decoder_forward.4} parent=0 // pred_check
    _
  $region3: #{encoder_attn_decoder_forward.4} parent=0 // pred_check_branch
    %10 = sbr.rel (0) target = $region5
  $region4: #{encoder_attn_decoder_forward.4} parent=0 // pred_region
    _
  $region5: #{encoder_attn_decoder_forward.4} parent=0 // pred_fallthru
    _
  // Predicated region
  $region6: #{encoder_attn_decoder_forward.4} parent=0 // pred_check
    _
  $region7: #{encoder_attn_decoder_forward.4} parent=0 // pred_check_branch
    %12 = sbr.rel (0) target = $region9
  $region8: #{encoder_attn_decoder_forward.4} parent=0 // pred_region
    _
  $region9: #{encoder_attn_decoder_forward.4} parent=0 // pred_fallthru
    _
  // Predicated region
  $region10: #{encoder_attn_decoder_forward.4} parent=0 // pred_check
    _
  $region11: #{encoder_attn_decoder_forward.4} parent=0 // pred_check_branch
    %14 = sbr.rel (0) target = $region13
  $region12: #{encoder_attn_decoder_forward.4} parent=0 // pred_region
    _
  $region13: #{encoder_attn_decoder_forward.4} parent=0 // pred_fallthru
    _
  // Predicated region
  $region14: #{encoder_attn_decoder_forward.4} parent=0 // pred_check
    _
  $region15: #{encoder_attn_decoder_forward.4} parent=0 // pred_check_branch
    %16 = sbr.rel (0) target = $region17
  $region16: #{encoder_attn_decoder_forward.4} parent=0 // pred_region
    _
  $region17: #{encoder_attn_decoder_forward.4} parent=0 // pred_fallthru
    _
  loop: start=0, step=1, limit=8
  $region18: #{encoder_attn_decoder_forward.4} parent=0 // loop_pre_header
    _
  $region19: #{encoder_attn_decoder_forward.4} parent=0 // loop_header
    %s18 = sphi 0, %s22
    %p19 = scmp.ge.s32.totalorder %s18, 8
    %v23 = vphi 0.0, %v392
    %v24 = vphi 0.0, %v390
  $region20: #{encoder_attn_decoder_forward.4} parent=0 // loop_header_branch
    %21 = sbr.rel (%p19) target = $region24
  $region21: #{encoder_attn_decoder_forward.4} parent=0 // loop_body
    %s25 = smul.u32 %s18, 8
    %s26 = scalar_lea.vmem %s0, %s25
    %v27 = vld [vmem:[%s26] sm:$0xff]
    %v28 = vld [vmem:[%s1] sm:$0xff]
    %v29 = vld [vmem:[%s1 + $0x8] sm:$0xff]
    %v30 = vld [vmem:[%s1 + $0x10] sm:$0xff]
    %v31 = vld [vmem:[%s1 + $0x18] sm:$0xff]
    %v32 = vld [vmem:[%s1 + $0x20] sm:$0xff]
    %v33 = vld [vmem:[%s1 + $0x28] sm:$0xff]
    %v34 = vld [vmem:[%s1 + $0x30] sm:$0xff]
    %v35 = vld [vmem:[%s1 + $0x38] sm:$0xff]
    %v36 = vld [vmem:[%s1 + $0x40] sm:$0xff]
    %v37 = vld [vmem:[%s1 + $0x48] sm:$0xff]
    %v38 = vld [vmem:[%s1 + $0x50] sm:$0xff]
    %v39 = vld [vmem:[%s1 + $0x58] sm:$0xff]
    %v40 = vld [vmem:[%s1 + $0x60] sm:$0xff]
    %v41 = vld [vmem:[%s1 + $0x68] sm:$0xff]
    %v42 = vld [vmem:[%s1 + $0x70] sm:$0xff]
    %v43 = vld [vmem:[%s1 + $0x78] sm:$0xff]
    %v44 = vld [vmem:[%s1 + $0x80] sm:$0xff]
    %v45 = vld [vmem:[%s1 + $0x88] sm:$0xff]
    %v46 = vld [vmem:[%s1 + $0x90] sm:$0xff]
    %v47 = vld [vmem:[%s1 + $0x98] sm:$0xff]
    %v48 = vld [vmem:[%s1 + $0xa0] sm:$0xff]
    %v49 = vld [vmem:[%s1 + $0xa8] sm:$0xff]
    %v50 = vld [vmem:[%s1 + $0xb0] sm:$0xff]
    %v51 = vld [vmem:[%s1 + $0xb8] sm:$0xff]
    %v52 = vld [vmem:[%s1 + $0xc0] sm:$0xff]
    %v53 = vld [vmem:[%s1 + $0xc8] sm:$0xff]
    %v54 = vld [vmem:[%s1 + $0xd0] sm:$0xff]
    %v55 = vld [vmem:[%s1 + $0xd8] sm:$0xff]
    %v56 = vld [vmem:[%s1 + $0xe0] sm:$0xff]
    %v57 = vld [vmem:[%s1 + $0xe8] sm:$0xff]
    %v58 = vld [vmem:[%s1 + $0xf0] sm:$0xff]
    %v59 = vld [vmem:[%s1 + $0xf8] sm:$0xff]
    %v60 = vld [vmem:[%s1 + $0x100] sm:$0xff]
    %v61 = vld [vmem:[%s1 + $0x108] sm:$0xff]
    %v62 = vld [vmem:[%s1 + $0x110] sm:$0xff]
    %v63 = vld [vmem:[%s1 + $0x118] sm:$0xff]
    %v64 = vld [vmem:[%s1 + $0x120] sm:$0xff]
    %v65 = vld [vmem:[%s1 + $0x128] sm:$0xff]
    %v66 = vld [vmem:[%s1 + $0x130] sm:$0xff]
    %v67 = vld [vmem:[%s1 + $0x138] sm:$0xff]
    %v68 = vld [vmem:[%s1 + $0x140] sm:$0xff]
    %v69 = vld [vmem:[%s1 + $0x148] sm:$0xff]
    %v70 = vld [vmem:[%s1 + $0x150] sm:$0xff]
    %v71 = vld [vmem:[%s1 + $0x158] sm:$0xff]
    %v72 = vld [vmem:[%s1 + $0x160] sm:$0xff]
    %v73 = vld [vmem:[%s1 + $0x168] sm:$0xff]
    %v74 = vld [vmem:[%s1 + $0x170] sm:$0xff]
    %v75 = vld [vmem:[%s1 + $0x178] sm:$0xff]
    %v76 = vld [vmem:[%s1 + $0x180] sm:$0xff]
    %v77 = vld [vmem:[%s1 + $0x188] sm:$0xff]
    %v78 = vld [vmem:[%s1 + $0x190] sm:$0xff]
    %v79 = vld [vmem:[%s1 + $0x198] sm:$0xff]
    %v80 = vld [vmem:[%s1 + $0x1a0] sm:$0xff]
    %v81 = vld [vmem:[%s1 + $0x1a8] sm:$0xff]
    %v82 = vld [vmem:[%s1 + $0x1b0] sm:$0xff]
    %v83 = vld [vmem:[%s1 + $0x1b8] sm:$0xff]
    %v84 = vld [vmem:[%s1 + $0x1c0] sm:$0xff]
    %v85 = vld [vmem:[%s1 + $0x1c8] sm:$0xff]
    %v86 = vld [vmem:[%s1 + $0x1d0] sm:$0xff]
    %v87 = vld [vmem:[%s1 + $0x1d8] sm:$0xff]
    %v88 = vld [vmem:[%s1 + $0x1e0] sm:$0xff]
    %v89 = vld [vmem:[%s1 + $0x1e8] sm:$0xff]
    %v90 = vld [vmem:[%s1 + $0x1f0] sm:$0xff]
    %v91 = vld [vmem:[%s1 + $0x1f8] sm:$0xff]
    %v92 = vld [vmem:[%s2] sm:$0xff]
    %v93 = vld [vmem:[%s2 + $0x8] sm:$0xff]
    %v94 = vld [vmem:[%s2 + $0x10] sm:$0xff]
    %v95 = vld [vmem:[%s2 + $0x18] sm:$0xff]
    %v96 = vld [vmem:[%s2 + $0x20] sm:$0xff]
    %v97 = vld [vmem:[%s2 + $0x28] sm:$0xff]
    %v98 = vld [vmem:[%s2 + $0x30] sm:$0xff]
    %v99 = vld [vmem:[%s2 + $0x38] sm:$0xff]
    %v100 = vld [vmem:[%s2 + $0x40] sm:$0xff]
    %v101 = vld [vmem:[%s2 + $0x48] sm:$0xff]
    %v102 = vld [vmem:[%s2 + $0x50] sm:$0xff]
    %v103 = vld [vmem:[%s2 + $0x58] sm:$0xff]
    %v104 = vld [vmem:[%s2 + $0x60] sm:$0xff]
    %v105 = vld [vmem:[%s2 + $0x68] sm:$0xff]
    %v106 = vld [vmem:[%s2 + $0x70] sm:$0xff]
    %v107 = vld [vmem:[%s2 + $0x78] sm:$0xff]
    %v108 = vld [vmem:[%s2 + $0x80] sm:$0xff]
    %v109 = vld [vmem:[%s2 + $0x88] sm:$0xff]
    %v110 = vld [vmem:[%s2 + $0x90] sm:$0xff]
    %v111 = vld [vmem:[%s2 + $0x98] sm:$0xff]
    %v112 = vld [vmem:[%s2 + $0xa0] sm:$0xff]
    %v113 = vld [vmem:[%s2 + $0xa8] sm:$0xff]
    %v114 = vld [vmem:[%s2 + $0xb0] sm:$0xff]
    %v115 = vld [vmem:[%s2 + $0xb8] sm:$0xff]
    %v116 = vld [vmem:[%s2 + $0xc0] sm:$0xff]
    %v117 = vld [vmem:[%s2 + $0xc8] sm:$0xff]
    %v118 = vld [vmem:[%s2 + $0xd0] sm:$0xff]
    %v119 = vld [vmem:[%s2 + $0xd8] sm:$0xff]
    %v120 = vld [vmem:[%s2 + $0xe0] sm:$0xff]
    %v121 = vld [vmem:[%s2 + $0xe8] sm:$0xff]
    %v122 = vld [vmem:[%s2 + $0xf0] sm:$0xff]
    %v123 = vld [vmem:[%s2 + $0xf8] sm:$0xff]
    %v124 = vld [vmem:[%s2 + $0x100] sm:$0xff]
    %v125 = vld [vmem:[%s2 + $0x108] sm:$0xff]
    %v126 = vld [vmem:[%s2 + $0x110] sm:$0xff]
    %v127 = vld [vmem:[%s2 + $0x118] sm:$0xff]
    %v128 = vld [vmem:[%s2 + $0x120] sm:$0xff]
    %v129 = vld [vmem:[%s2 + $0x128] sm:$0xff]
    %v130 = vld [vmem:[%s2 + $0x130] sm:$0xff]
    %v131 = vld [vmem:[%s2 + $0x138] sm:$0xff]
    %v132 = vld [vmem:[%s2 + $0x140] sm:$0xff]
    %v133 = vld [vmem:[%s2 + $0x148] sm:$0xff]
    %v134 = vld [vmem:[%s2 + $0x150] sm:$0xff]
    %v135 = vld [vmem:[%s2 + $0x158] sm:$0xff]
    %v136 = vld [vmem:[%s2 + $0x160] sm:$0xff]
    %v137 = vld [vmem:[%s2 + $0x168] sm:$0xff]
    %v138 = vld [vmem:[%s2 + $0x170] sm:$0xff]
    %v139 = vld [vmem:[%s2 + $0x178] sm:$0xff]
    %v140 = vld [vmem:[%s2 + $0x180] sm:$0xff]
    %v141 = vld [vmem:[%s2 + $0x188] sm:$0xff]
    %v142 = vld [vmem:[%s2 + $0x190] sm:$0xff]
    %v143 = vld [vmem:[%s2 + $0x198] sm:$0xff]
    %v144 = vld [vmem:[%s2 + $0x1a0] sm:$0xff]
    %v145 = vld [vmem:[%s2 + $0x1a8] sm:$0xff]
    %v146 = vld [vmem:[%s2 + $0x1b0] sm:$0xff]
    %v147 = vld [vmem:[%s2 + $0x1b8] sm:$0xff]
    %v148 = vld [vmem:[%s2 + $0x1c0] sm:$0xff]
    %v149 = vld [vmem:[%s2 + $0x1c8] sm:$0xff]
    %v150 = vld [vmem:[%s2 + $0x1d0] sm:$0xff]
    %v151 = vld [vmem:[%s2 + $0x1d8] sm:$0xff]
    %v152 = vld [vmem:[%s2 + $0x1e0] sm:$0xff]
    %v153 = vld [vmem:[%s2 + $0x1e8] sm:$0xff]
    %v154 = vld [vmem:[%s2 + $0x1f0] sm:$0xff]
    %v155 = vld [vmem:[%s2 + $0x1f8] sm:$0xff]
    %v156 = vld [vmem:[%s3] sm:$0xf]
    %157 = vmatpush.msra.mxu0 %v152
    %158 = vmatpush.msra.mxu0 %v148
    %159 = vmatpush.msra.mxu0 %v144
    %160 = vmatpush.msra.mxu0 %v140
    %161 = vmatpush.msra.mxu0 %v136
    %162 = vmatpush.msra.mxu0 %v132
    %163 = vmatpush.msra.mxu0 %v128
    %164 = vmatpush.msra.mxu0 %v124
    %165 = vmatpush.msra.mxu0 %v120
    %166 = vmatpush.msra.mxu0 %v116
    %167 = vmatpush.msra.mxu0 %v112
    %168 = vmatpush.msra.mxu0 %v108
    %169 = vmatpush.msra.mxu0 %v104
    %170 = vmatpush.msra.mxu0 %v100
    %171 = vmatpush.msra.mxu0 %v96
    %172 = vmatpush.msra.mxu0 %v92
    %173 = vmatmul.f32.gmra.mxu0 %v23
    %v174 = vpop.f32.mrf.mxu0
    %v175 = vadd.f32 0.0, %v174
    %176 = vdwg.mxu0
    %177 = vmatpush.msra.mxu0 %v153
    %178 = vmatpush.msra.mxu0 %v149
    %179 = vmatpush.msra.mxu0 %v145
    %180 = vmatpush.msra.mxu0 %v141
    %181 = vmatpush.msra.mxu0 %v137
    %182 = vmatpush.msra.mxu0 %v133
    %183 = vmatpush.msra.mxu0 %v129
    %184 = vmatpush.msra.mxu0 %v125
    %185 = vmatpush.msra.mxu0 %v121
    %186 = vmatpush.msra.mxu0 %v117
    %187 = vmatpush.msra.mxu0 %v113
    %188 = vmatpush.msra.mxu0 %v109
    %189 = vmatpush.msra.mxu0 %v105
    %190 = vmatpush.msra.mxu0 %v101
    %191 = vmatpush.msra.mxu0 %v97
    %192 = vmatpush.msra.mxu0 %v93
    %193 = vmatmul.f32.gmra.mxu0 %v23
    %v194 = vpop.f32.mrf.mxu0
    %v195 = vadd.f32 0.0, %v194
    %196 = vdwg.mxu0
    %197 = vmatpush.msra.mxu0 %v154
    %198 = vmatpush.msra.mxu0 %v150
    %199 = vmatpush.msra.mxu0 %v146
    %200 = vmatpush.msra.mxu0 %v142
    %201 = vmatpush.msra.mxu0 %v138
    %202 = vmatpush.msra.mxu0 %v134
    %203 = vmatpush.msra.mxu0 %v130
    %204 = vmatpush.msra.mxu0 %v126
    %205 = vmatpush.msra.mxu0 %v122
    %206 = vmatpush.msra.mxu0 %v118
    %207 = vmatpush.msra.mxu0 %v114
    %208 = vmatpush.msra.mxu0 %v110
    %209 = vmatpush.msra.mxu0 %v106
    %210 = vmatpush.msra.mxu0 %v102
    %211 = vmatpush.msra.mxu0 %v98
    %212 = vmatpush.msra.mxu0 %v94
    %213 = vmatmul.f32.gmra.mxu0 %v23
    %v214 = vpop.f32.mrf.mxu0
    %v215 = vadd.f32 0.0, %v214
    %216 = vdwg.mxu0
    %217 = vmatpush.msra.mxu0 %v155
    %218 = vmatpush.msra.mxu0 %v151
    %219 = vmatpush.msra.mxu0 %v147
    %220 = vmatpush.msra.mxu0 %v143
    %221 = vmatpush.msra.mxu0 %v139
    %222 = vmatpush.msra.mxu0 %v135
    %223 = vmatpush.msra.mxu0 %v131
    %224 = vmatpush.msra.mxu0 %v127
    %225 = vmatpush.msra.mxu0 %v123
    %226 = vmatpush.msra.mxu0 %v119
    %227 = vmatpush.msra.mxu0 %v115
    %228 = vmatpush.msra.mxu0 %v111
    %229 = vmatpush.msra.mxu0 %v107
    %230 = vmatpush.msra.mxu0 %v103
    %231 = vmatpush.msra.mxu0 %v99
    %232 = vmatpush.msra.mxu0 %v95
    %233 = vmatmul.f32.gmra.mxu0 %v23
    %v234 = vpop.f32.mrf.mxu0
    %v235 = vadd.f32 0.0, %v234
    %236 = vdwg.mxu0
    %237 = vmatpush.msra.mxu0 %v88
    %238 = vmatpush.msra.mxu0 %v84
    %239 = vmatpush.msra.mxu0 %v80
    %240 = vmatpush.msra.mxu0 %v76
    %241 = vmatpush.msra.mxu0 %v72
    %242 = vmatpush.msra.mxu0 %v68
    %243 = vmatpush.msra.mxu0 %v64
    %244 = vmatpush.msra.mxu0 %v60
    %245 = vmatpush.msra.mxu0 %v56
    %246 = vmatpush.msra.mxu0 %v52
    %247 = vmatpush.msra.mxu0 %v48
    %248 = vmatpush.msra.mxu0 %v44
    %249 = vmatpush.msra.mxu0 %v40
    %250 = vmatpush.msra.mxu0 %v36
    %251 = vmatpush.msra.mxu0 %v32
    %252 = vmatpush.msra.mxu0 %v28
    %253 = vmatmul.f32.gmra.mxu0 %v27
    %v254 = vpop.f32.mrf.mxu0
    %v255 = vadd.f32 %v175, %v254
    %256 = vdwg.mxu0
    %257 = vmatpush.msra.mxu0 %v89
    %258 = vmatpush.msra.mxu0 %v85
    %259 = vmatpush.msra.mxu0 %v81
    %260 = vmatpush.msra.mxu0 %v77
    %261 = vmatpush.msra.mxu0 %v73
    %262 = vmatpush.msra.mxu0 %v69
    %263 = vmatpush.msra.mxu0 %v65
    %264 = vmatpush.msra.mxu0 %v61
    %265 = vmatpush.msra.mxu0 %v57
    %266 = vmatpush.msra.mxu0 %v53
    %267 = vmatpush.msra.mxu0 %v49
    %268 = vmatpush.msra.mxu0 %v45
    %269 = vmatpush.msra.mxu0 %v41
    %270 = vmatpush.msra.mxu0 %v37
    %271 = vmatpush.msra.mxu0 %v33
    %272 = vmatpush.msra.mxu0 %v29
    %273 = vmatmul.f32.gmra.mxu0 %v27
    %v274 = vpop.f32.mrf.mxu0
    %v275 = vadd.f32 %v195, %v274
    %276 = vdwg.mxu0
    %277 = vmatpush.msra.mxu0 %v90
    %278 = vmatpush.msra.mxu0 %v86
    %279 = vmatpush.msra.mxu0 %v82
    %280 = vmatpush.msra.mxu0 %v78
    %281 = vmatpush.msra.mxu0 %v74
    %282 = vmatpush.msra.mxu0 %v70
    %283 = vmatpush.msra.mxu0 %v66
    %284 = vmatpush.msra.mxu0 %v62
    %285 = vmatpush.msra.mxu0 %v58
    %286 = vmatpush.msra.mxu0 %v54
    %287 = vmatpush.msra.mxu0 %v50
    %288 = vmatpush.msra.mxu0 %v46
    %289 = vmatpush.msra.mxu0 %v42
    %290 = vmatpush.msra.mxu0 %v38
    %291 = vmatpush.msra.mxu0 %v34
    %292 = vmatpush.msra.mxu0 %v30
    %293 = vmatmul.f32.gmra.mxu0 %v27
    %v294 = vpop.f32.mrf.mxu0
    %v295 = vadd.f32 %v215, %v294
    %296 = vdwg.mxu0
    %297 = vmatpush.msra.mxu0 %v91
    %298 = vmatpush.msra.mxu0 %v87
    %299 = vmatpush.msra.mxu0 %v83
    %300 = vmatpush.msra.mxu0 %v79
    %301 = vmatpush.msra.mxu0 %v75
    %302 = vmatpush.msra.mxu0 %v71
    %303 = vmatpush.msra.mxu0 %v67
    %304 = vmatpush.msra.mxu0 %v63
    %305 = vmatpush.msra.mxu0 %v59
    %306 = vmatpush.msra.mxu0 %v55
    %307 = vmatpush.msra.mxu0 %v51
    %308 = vmatpush.msra.mxu0 %v47
    %309 = vmatpush.msra.mxu0 %v43
    %310 = vmatpush.msra.mxu0 %v39
    %311 = vmatpush.msra.mxu0 %v35
    %312 = vmatpush.msra.mxu0 %v31
    %313 = vmatmul.f32.gmra.mxu0 %v27
    %v314 = vpop.f32.mrf.mxu0
    %v315 = vadd.f32 %v235, %v314
    %316 = vdwg.mxu0
    %v318 = vperm.slane %v156, 0
    %v319 = vperm.slane %v156, 1
    %v320 = vperm.slane %v156, 2
    %v321 = vperm.slane %v156, 3
    %v326 = vadd.f32 %v255, %v318
    %v327 = vadd.f32 %v275, %v319
    %v328 = vadd.f32 %v295, %v320
    %v329 = vadd.f32 %v315, %v321
    %v330 = vxor.u32 %v326, 2147483648
    %v331 = vxor.u32 %v327, 2147483648
    %v332 = vxor.u32 %v328, 2147483648
    %v333 = vmul.f32 %v330, 1.442695
    %v334 = vpow.pop %v333
    %v335 = vmul.f32 %v331, 1.442695
    %v336 = vpow.pop %v335
    %v337 = vmul.f32 %v332, 1.442695
    %v338 = vpow.pop %v337
    %v339 = vadd.f32 %v334, 1.0
    %v340 = vadd.f32 %v336, 1.0
    %v341 = vadd.f32 %v338, 1.0
    %v342 = vrcp.pop %v339
    %v343 = vmul.f32 %v339, %v342
    %v344 = vsub.f32 1.0, %v343
    %v345 = vmul.f32 %v342, %v344
    %v346 = vadd.f32 %v342, %v345
    %vm347 = vweird.f32 %v339
    %vm348 = vweird.f32 %v342
    %vm349 = vmor %vm347, %vm348
    %v350 = vsel %vm349, %v342, %v346
    %v351 = vand.u32 2147483647, %v339
    %vm352 = vcmp.eq.f32.partialorder %v351, 8.507059e+37
    %v353 = vand.u32 %v339, 2147483648
    %v354 = vor.u32 1.1754944e-38, %v353
    %v355 = vsel %vm352, %v354, %v350
    %v356 = vmul.f32 1.0, %v355
    %v357 = vrcp.pop %v340
    %v358 = vmul.f32 %v340, %v357
    %v359 = vsub.f32 1.0, %v358
    %v360 = vmul.f32 %v357, %v359
    %v361 = vadd.f32 %v357, %v360
    %vm362 = vweird.f32 %v340
    %vm363 = vweird.f32 %v357
    %vm364 = vmor %vm362, %vm363
    %v365 = vsel %vm364, %v357, %v361
    %v366 = vand.u32 2147483647, %v340
    %vm367 = vcmp.eq.f32.partialorder %v366, 8.507059e+37
    %v368 = vand.u32 %v340, 2147483648
    %v369 = vor.u32 1.1754944e-38, %v368
    %v370 = vsel %vm367, %v369, %v365
    %v371 = vmul.f32 1.0, %v370
    %v372 = vrcp.pop %v341
    %v373 = vmul.f32 %v341, %v372
    %v374 = vsub.f32 1.0, %v373
    %v375 = vmul.f32 %v372, %v374
    %v376 = vadd.f32 %v372, %v375
    %vm377 = vweird.f32 %v341
    %vm378 = vweird.f32 %v372
    %vm379 = vmor %vm377, %vm378
    %v380 = vsel %vm379, %v372, %v376
    %v381 = vand.u32 2147483647, %v341
    %vm382 = vcmp.eq.f32.partialorder %v381, 8.507059e+37
    %v383 = vand.u32 %v341, 2147483648
    %v384 = vor.u32 1.1754944e-38, %v383
    %v385 = vsel %vm382, %v384, %v380
    %v386 = vmul.f32 1.0, %v385
    %v387 = vtanh.pop %v329
    %v388 = vmul.f32 %v371, %v24
    %v389 = vmul.f32 %v356, %v387
    %v390 = vadd.f32 %v388, %v389
    %v391 = vtanh.pop %v390
    %v392 = vmul.f32 %v386, %v391
    %s393 = scalar_lea.vmem %s4, %s25
    %394 = vst [vmem:[%s393] sm:$0xff] %v392
  $region22: #{encoder_attn_decoder_forward.4} parent=0 // loop_footer
    %s22 = sadd.s32 1, %s18
  $region23: #{encoder_attn_decoder_forward.4} parent=0 // loop_footer_branch
    %17 = sbr.rel target = $region19
  $region24: #{encoder_attn_decoder_forward.4} parent=0 // loop_exit
    _
  // Predicated region
  $region25: #{encoder_attn_decoder_forward.4} parent=0 // pred_check
    _
  $region26: #{encoder_attn_decoder_forward.4} parent=0 // pred_check_branch
    %396 = sbr.rel (0) target = $region28
  $region27: #{encoder_attn_decoder_forward.4} parent=0 // pred_region
    _
  $region28: #{encoder_attn_decoder_forward.4} parent=0 // pred_fallthru
    _
  // Predicated region
  $region29: #{encoder_attn_decoder_forward.4} parent=0 // pred_check
    _
  $region30: #{encoder_attn_decoder_forward.4} parent=0 // pred_check_branch
    %398 = sbr.rel (0) target = $region32
  $region31: #{encoder_attn_decoder_forward.4} parent=0 // pred_region
    _
  $region32: #{encoder_attn_decoder_forward.4} parent=0 // pred_fallthru
    _

// kernel: encoder_attn_decoder_forward.6
$region0: #{encoder_attn_decoder_forward.6}
  #allocation0 [shape = 'u32[]', space=smem, size = 0x4, offset = 0x4, fixed_abs, tag = 'smem constant byte address 0x4 - core index']
  #allocation1 [shape = 'u32[72,128]{1,0:T(1,128)}', space=vmem, size = 0x9000, scoped, tag = 'internal scratch']
  %s0 = inlined_call_operand.vmem [shape: f32[8,8,8], index: 0, kind: input, shape index: {}]
  %s1 = inlined_call_operand.vmem [shape: f32[8,8,128], index: 1, kind: input, shape index: {}]
  %s2 = inlined_call_operand.vmem [shape: f32[8,8,128], index: 2, kind: input, shape index: {}]
  %s3 = inlined_call_operand.vmem [shape: f32[2,8,128], index: 3, kind: input, shape index: {}]
  %s4 = inlined_call_operand.vmem [shape: f32[2,8,128], index: 4, kind: input, shape index: {}]
  %s5 = inlined_call_operand.vmem [shape: f32[128,8], index: 5, kind: input, shape index: {}]
  %s6 = inlined_call_operand.vmem [shape: f32[128,128], index: 6, kind: input, shape index: {}]
  %s7 = inlined_call_operand.hbm [shape: f32[2,128,512], index: 7, kind: input, shape index: {}]
  %s8 = inlined_call_operand.hbm [shape: f32[2,128,512], index: 8, kind: input, shape index: {}]
  %s9 = inlined_call_operand.vmem [shape: f32[2,1,512], index: 9, kind: input, shape index: {}]
  %s10 = inlined_call_operand.vmem [shape: f32[8,8,128], index: 10, kind: output, shape index: {}]
  %s11 = sld [smem:[#allocation0]]
  $region65: #{encoder_attn_decoder_forward.6} parent=0
    _
  %s13 = ssub.s32 1, %s11
  %s14 = scalar_select 0, %s13, %s11
  $region1: #{encoder_attn_decoder_forward.6} parent=0
    #allocation2 [shape = 'u8[524288]{0}', space=vmem, size = 0x80000, scoped, tag = 'input window, operand 7, single buffered']
    #allocation3 [shape = 's32[1]{0}', space=sflag, size = 0x4, scoped, tag = 'scoped memory for encoder_attn_decoder_forward.6']
    #allocation4 [shape = 'u8[524288]{0}', space=vmem, size = 0x80000, scoped, tag = 'input window, operand 8, single buffered']
    #allocation5 [shape = 's32[1]{0}', space=sflag, size = 0x4, scoped, tag = 'scoped memory for encoder_attn_decoder_forward.6']
    %15 = vsyncpa [#allocation3], 0
    %16 = vsyncpa [#allocation5], 0
    // Predicated region
    $region2: #{encoder_attn_decoder_forward.6} parent=1 // pred_check
      _
    $region3: #{encoder_attn_decoder_forward.6} parent=1 // pred_check_branch
      %18 = sbr.rel (0) target = $region5
    $region4: #{encoder_attn_decoder_forward.6} parent=1 // pred_region
      _
    $region5: #{encoder_attn_decoder_forward.6} parent=1 // pred_fallthru
      _
    // Predicated region
    $region6: #{encoder_attn_decoder_forward.6} parent=1 // pred_check
      _
    $region7: #{encoder_attn_decoder_forward.6} parent=1 // pred_check_branch
      %20 = sbr.rel (0) target = $region9
    $region8: #{encoder_attn_decoder_forward.6} parent=1 // pred_region
      _
    $region9: #{encoder_attn_decoder_forward.6} parent=1 // pred_fallthru
      _
    // Predicated region
    $region10: #{encoder_attn_decoder_forward.6} parent=1 // pred_check
      _
    $region11: #{encoder_attn_decoder_forward.6} parent=1 // pred_check_branch
      %22 = sbr.rel (0) target = $region13
    $region12: #{encoder_attn_decoder_forward.6} parent=1 // pred_region
      _
    $region13: #{encoder_attn_decoder_forward.6} parent=1 // pred_fallthru
      _
    // Predicated region
    $region14: #{encoder_attn_decoder_forward.6} parent=1 // pred_check
      _
    $region15: #{encoder_attn_decoder_forward.6} parent=1 // pred_check_branch
      %24 = sbr.rel (0) target = $region17
    $region16: #{encoder_attn_decoder_forward.6} parent=1 // pred_region
      _
    $region17: #{encoder_attn_decoder_forward.6} parent=1 // pred_fallthru
      _
    // Predicated region
    $region18: #{encoder_attn_decoder_forward.6} parent=1 // pred_check
      _
    $region19: #{encoder_attn_decoder_forward.6} parent=1 // pred_check_branch
      %26 = sbr.rel (0) target = $region21
    $region20: #{encoder_attn_decoder_forward.6} parent=1 // pred_region
      _
    $region21: #{encoder_attn_decoder_forward.6} parent=1 // pred_fallthru
      _
    // Predicated region
    $region22: #{encoder_attn_decoder_forward.6} parent=1 // pred_check
      _
    $region23: #{encoder_attn_decoder_forward.6} parent=1 // pred_check_branch
      %28 = sbr.rel (0) target = $region25
    $region24: #{encoder_attn_decoder_forward.6} parent=1 // pred_region
      _
    $region25: #{encoder_attn_decoder_forward.6} parent=1 // pred_fallthru
      _
    // Predicated region
    $region26: #{encoder_attn_decoder_forward.6} parent=1 // pred_check
      _
    $region27: #{encoder_attn_decoder_forward.6} parent=1 // pred_check_branch
      %30 = sbr.rel (0) target = $region29
    $region28: #{encoder_attn_decoder_forward.6} parent=1 // pred_region
      _
    $region29: #{encoder_attn_decoder_forward.6} parent=1 // pred_fallthru
      _
    // Predicated region
    $region30: #{encoder_attn_decoder_forward.6} parent=1 // pred_check
      _
    $region31: #{encoder_attn_decoder_forward.6} parent=1 // pred_check_branch
      %32 = sbr.rel (0) target = $region33
    $region32: #{encoder_attn_decoder_forward.6} parent=1 // pred_region
      %34 = vsyncadd [#allocation3], 0
      %s35 = sshll.u32 %s7, 4
      %s36 = int_to_ptr.hbm [resolvable:$true] %s35
      %s37 = sshll.u32 [#allocation2], 4
      %s38 = int_to_ptr.vmem [resolvable:$true] %s37
      %43 = dma.hbm_to_vmem [thread:$0]  %s36, 16384, %s38, [#allocation3], 512, 512, 32
    $region33: #{encoder_attn_decoder_forward.6} parent=1 // pred_fallthru
      _
    // Predicated region
    $region34: #{encoder_attn_decoder_forward.6} parent=1 // pred_check
      _
    $region35: #{encoder_attn_decoder_forward.6} parent=1 // pred_check_branch
      %45 = sbr.rel (0) target = $region37
    $region36: #{encoder_attn_decoder_forward.6} parent=1 // pred_region
      %47 = vsyncadd [#allocation5], 0
      %s48 = sshll.u32 %s8, 4
      %s49 = int_to_ptr.hbm [resolvable:$true] %s48
      %s50 = sshll.u32 [#allocation4], 4
      %s51 = int_to_ptr.vmem [resolvable:$true] %s50
      %56 = dma.hbm_to_vmem [thread:$0]  %s49, 16384, %s51, [#allocation5], 512, 512, 32
    $region37: #{encoder_attn_decoder_forward.6} parent=1 // pred_fallthru
      _
    // Predicated region
    $region38: #{encoder_attn_decoder_forward.6} parent=1 // pred_check
      _
    $region39: #{encoder_attn_decoder_forward.6} parent=1 // pred_check_branch
      %58 = sbr.rel (0) target = $region41
    $region40: #{encoder_attn_decoder_forward.6} parent=1 // pred_region
      _
    $region41: #{encoder_attn_decoder_forward.6} parent=1 // pred_fallthru
      _
    // Predicated region
    $region42: #{encoder_attn_decoder_forward.6} parent=1 // pred_check
      _
    $region43: #{encoder_attn_decoder_forward.6} parent=1 // pred_check_branch
      %60 = sbr.rel (0) target = $region45
    $region44: #{encoder_attn_decoder_forward.6} parent=1 // pred_region
      %62 = dma.done [#allocation3], 16384
    $region45: #{encoder_attn_decoder_forward.6} parent=1 // pred_fallthru
      _
    // Predicated region
    $region46: #{encoder_attn_decoder_forward.6} parent=1 // pred_check
      _
    $region47: #{encoder_attn_decoder_forward.6} parent=1 // pred_check_branch
      %64 = sbr.rel (0) target = $region49
    $region48: #{encoder_attn_decoder_forward.6} parent=1 // pred_region
      %66 = dma.done [#allocation5], 16384
    $region49: #{encoder_attn_decoder_forward.6} parent=1 // pred_fallthru
      _
    %v67 = vld [vmem:[%s3] sm:$0xff]
    %s68 = scalar_lea.vmem %s3, 8
    %v69 = vld [vmem:[%s68] sm:$0xff]
    %v70 = vld [vmem:[%s4] sm:$0xff]
    %s71 = scalar_lea.vmem %s4, 8
    %v72 = vld [vmem:[%s71] sm:$0xff]
    loop: start=0, step=1, limit=8
    $region50: #{encoder_attn_decoder_forward.6} parent=1 // loop_pre_header
      _
    $region51: #{encoder_attn_decoder_forward.6} parent=1 // loop_header
      %s74 = sphi 0, %s78
      %p75 = scmp.ge.s32.totalorder %s74, 8
      %v79 = vphi %v67, %v602
      %v80 = vphi %v69, %v970
      %v81 = vphi %v70, %v600
      %v82 = vphi %v72, %v968
    $region52: #{encoder_attn_decoder_forward.6} parent=1 // loop_header_branch
      %77 = sbr.rel (%p75) target = $region56
    $region53: #{encoder_attn_decoder_forward.6} parent=1 // loop_body
      %s83 = smul.u32 %s74, 8
      %s84 = scalar_lea.vmem %s0, %s83
      %v85 = vld [vmem:[%s84] sm:$0xff]
      %v86 = vld [vmem:[%s5] sm:$0xff]
      %v87 = vld [vmem:[%s5 + $0x8] sm:$0xff]
      %v88 = vld [vmem:[%s5 + $0x10] sm:$0xff]
      %v89 = vld [vmem:[%s5 + $0x18] sm:$0xff]
      %v90 = vld [vmem:[%s5 + $0x20] sm:$0xff]
      %v91 = vld [vmem:[%s5 + $0x28] sm:$0xff]
      %v92 = vld [vmem:[%s5 + $0x30] sm:$0xff]
      %v93 = vld [vmem:[%s5 + $0x38] sm:$0xff]
      %v94 = vld [vmem:[%s5 + $0x40] sm:$0xff]
      %v95 = vld [vmem:[%s5 + $0x48] sm:$0xff]
      %v96 = vld [vmem:[%s5 + $0x50] sm:$0xff]
      %v97 = vld [vmem:[%s5 + $0x58] sm:$0xff]
      %v98 = vld [vmem:[%s5 + $0x60] sm:$0xff]
      %v99 = vld [vmem:[%s5 + $0x68] sm:$0xff]
      %v100 = vld [vmem:[%s5 + $0x70] sm:$0xff]
      %v101 = vld [vmem:[%s5 + $0x78] sm:$0xff]
      %102 = vmatpush.msra.mxu0 %v101
      %103 = vmatpush.msra.mxu0 %v100
      %104 = vmatpush.msra.mxu0 %v99
      %105 = vmatpush.msra.mxu0 %v98
      %106 = vmatpush.msra.mxu0 %v97
      %107 = vmatpush.msra.mxu0 %v96
      %108 = vmatpush.msra.mxu0 %v95
      %109 = vmatpush.msra.mxu0 %v94
      %110 = vmatpush.msra.mxu0 %v93
      %111 = vmatpush.msra.mxu0 %v92
      %112 = vmatpush.msra.mxu0 %v91
      %113 = vmatpush.msra.mxu0 %v90
      %114 = vmatpush.msra.mxu0 %v89
      %115 = vmatpush.msra.mxu0 %v88
      %116 = vmatpush.msra.mxu0 %v87
      %117 = vmatpush.msra.mxu0 %v86
      %118 = vmatmul.f32.gmra.mxu0 %v80
      %v119 = vpop.f32.mrf.mxu0
      %v120 = vadd.f32 0.0, %v119
      %121 = vdwg.mxu0
      %v122 = vadd.f32 %v85, %v120
      %vm123 = vcmask 64512
      %v124 = vsel %vm123, %v122, -inf
      %125 = vmax.xlane.f32.xlu0 %v124
      %v126 = vpop.xlane.xlu0 %125
      %v127 = vsub.f32 %v122, %v126
      %v128 = vmul.f32 %v127, 1.442695
      %v129 = vpow.pop %v128
      %v130 = vsel %vm123, %v129, 0.0
      %131 = vadd.xlane.f32.xlu0 %v130
      %v132 = vpop.xlane.xlu0 %131
      %v133 = vrcp.pop %v132
      %v134 = vmul.f32 %v129, %v133
      %v135 = vld [vmem:[%s2] sm:$0xff]
      %137 = vset.pattern.permute.xlu0 0
      %138 = vperm.xlu0 %137, %v134
      %v139 = vpop.permute.xlu0 %138
      %v141 = vmul.f32 %v139, %v135
      %s142 = scalar_lea.vmem %s2, 8
      %v143 = vld [vmem:[%s142] sm:$0xff]
      %144 = vset.pattern.permute.xlu0 1
      %145 = vperm.xlu0 %144, %v134
      %v146 = vpop.permute.xlu0 %145
      %v148 = vmul.f32 %v146, %v143
      %v149 = vadd.f32 %v141, %v148
      %s150 = scalar_lea.vmem %s2, 16
      %v151 = vld [vmem:[%s150] sm:$0xff]
      %152 = vset.pattern.permute.xlu0 2
      %153 = vperm.xlu0 %152, %v134
      %v154 = vpop.permute.xlu0 %153
      %v156 = vmul.f32 %v154, %v151
      %v157 = vadd.f32 %v149, %v156
      %s158 = scalar_lea.vmem %s2, 24
      %v159 = vld [vmem:[%s158] sm:$0xff]
      %160 = vset.pattern.permute.xlu0 3
      %161 = vperm.xlu0 %160, %v134
      %v162 = vpop.permute.xlu0 %161
      %v164 = vmul.f32 %v162, %v159
      %v165 = vadd.f32 %v157, %v164
      %s166 = scalar_lea.vmem %s2, 32
      %v167 = vld [vmem:[%s166] sm:$0xff]
      %168 = vset.pattern.permute.xlu0 4
      %169 = vperm.xlu0 %168, %v134
      %v170 = vpop.permute.xlu0 %169
      %v172 = vmul.f32 %v170, %v167
      %v173 = vadd.f32 %v165, %v172
      %s174 = scalar_lea.vmem %s2, 40
      %v175 = vld [vmem:[%s174] sm:$0xff]
      %176 = vset.pattern.permute.xlu0 5
      %177 = vperm.xlu0 %176, %v134
      %v178 = vpop.permute.xlu0 %177
      %v180 = vmul.f32 %v178, %v175
      %v181 = vadd.f32 %v173, %v180
      %s182 = scalar_lea.vmem %s2, 48
      %v183 = vld [vmem:[%s182] sm:$0xff]
      %184 = vset.pattern.permute.xlu0 6
      %185 = vperm.xlu0 %184, %v134
      %v186 = vpop.permute.xlu0 %185
      %v188 = vmul.f32 %v186, %v183
      %v189 = vadd.f32 %v181, %v188
      %s190 = scalar_lea.vmem %s2, 56
      %v191 = vld [vmem:[%s190] sm:$0xff]
      %192 = vset.pattern.permute.xlu0 7
      %193 = vperm.xlu0 %192, %v134
      %v194 = vpop.permute.xlu0 %193
      %v196 = vmul.f32 %v194, %v191
      %v197 = vadd.f32 %v189, %v196
      %s198 = scalar_lea.vmem %s1, %s83
      %v199 = vld [vmem:[%s198] sm:$0xff]
      %v200 = vld [vmem:[%s6] sm:$0xff]
      %v201 = vld [vmem:[%s6 + $0x8] sm:$0xff]
      %v202 = vld [vmem:[%s6 + $0x10] sm:$0xff]
      %v203 = vld [vmem:[%s6 + $0x18] sm:$0xff]
      %v204 = vld [vmem:[%s6 + $0x20] sm:$0xff]
      %v205 = vld [vmem:[%s6 + $0x28] sm:$0xff]
      %v206 = vld [vmem:[%s6 + $0x30] sm:$0xff]
      %v207 = vld [vmem:[%s6 + $0x38] sm:$0xff]
      %v208 = vld [vmem:[%s6 + $0x40] sm:$0xff]
      %v209 = vld [vmem:[%s6 + $0x48] sm:$0xff]
      %v210 = vld [vmem:[%s6 + $0x50] sm:$0xff]
      %v211 = vld [vmem:[%s6 + $0x58] sm:$0xff]
      %v212 = vld [vmem:[%s6 + $0x60] sm:$0xff]
      %v213 = vld [vmem:[%s6 + $0x68] sm:$0xff]
      %v214 = vld [vmem:[%s6 + $0x70] sm:$0xff]
      %v215 = vld [vmem:[%s6 + $0x78] sm:$0xff]
      %216 = vmatpush.msra.mxu0 %v215
      %217 = vmatpush.msra.mxu0 %v214
      %218 = vmatpush.msra.mxu0 %v213
      %219 = vmatpush.msra.mxu0 %v212
      %220 = vmatpush.msra.mxu0 %v211
      %221 = vmatpush.msra.mxu0 %v210
      %222 = vmatpush.msra.mxu0 %v209
      %223 = vmatpush.msra.mxu0 %v208
      %224 = vmatpush.msra.mxu0 %v207
      %225 = vmatpush.msra.mxu0 %v206
      %226 = vmatpush.msra.mxu0 %v205
      %227 = vmatpush.msra.mxu0 %v204
      %228 = vmatpush.msra.mxu0 %v203
      %229 = vmatpush.msra.mxu0 %v202
      %230 = vmatpush.msra.mxu0 %v201
      %231 = vmatpush.msra.mxu0 %v200
      %232 = vmatmul.f32.gmra.mxu0 %v197
      %v233 = vpop.f32.mrf.mxu0
      %v234 = vadd.f32 0.0, %v233
      %235 = vdwg.mxu0
      %v236 = vadd.f32 %v199, %v234
      %v237 = vmax.f32 %v236, 0.0
      %v238 = vld [vmem:[#allocation2] sm:$0xff]
      %v239 = vld [vmem:[#allocation2 + $0x8] sm:$0xff]
      %v240 = vld [vmem:[#allocation2 + $0x10] sm:$0xff]
      %v241 = vld [vmem:[#allocation2 + $0x18] sm:$0xff]
      %v242 = vld [vmem:[#allocation2 + $0x20] sm:$0xff]
      %v243 = vld [vmem:[#allocation2 + $0x28] sm:$0xff]
      %v244 = vld [vmem:[#allocation2 + $0x30] sm:$0xff]
      %v245 = vld [vmem:[#allocation2 + $0x38] sm:$0xff]
      %v246 = vld [vmem:[#allocation2 + $0x40] sm:$0xff]
      %v247 = vld [vmem:[#allocation2 + $0x48] sm:$0xff]
      %v248 = vld [vmem:[#allocation2 + $0x50] sm:$0xff]
      %v249 = vld [vmem:[#allocation2 + $0x58] sm:$0xff]
      %v250 = vld [vmem:[#allocation2 + $0x60] sm:$0xff]
      %v251 = vld [vmem:[#allocation2 + $0x68] sm:$0xff]
      %v252 = vld [vmem:[#allocation2 + $0x70] sm:$0xff]
      %v253 = vld [vmem:[#allocation2 + $0x78] sm:$0xff]
      %v254 = vld [vmem:[#allocation2 + $0x80] sm:$0xff]
      %v255 = vld [vmem:[#allocation2 + $0x88] sm:$0xff]
      %v256 = vld [vmem:[#allocation2 + $0x90] sm:$0xff]
      %v257 = vld [vmem:[#allocation2 + $0x98] sm:$0xff]
      %v258 = vld [vmem:[#allocation2 + $0xa0] sm:$0xff]
      %v259 = vld [vmem:[#allocation2 + $0xa8] sm:$0xff]
      %v260 = vld [vmem:[#allocation2 + $0xb0] sm:$0xff]
      %v261 = vld [vmem:[#allocation2 + $0xb8] sm:$0xff]
      %v262 = vld [vmem:[#allocation2 + $0xc0] sm:$0xff]
      %v263 = vld [vmem:[#allocation2 + $0xc8] sm:$0xff]
      %v264 = vld [vmem:[#allocation2 + $0xd0] sm:$0xff]
      %v265 = vld [vmem:[#allocation2 + $0xd8] sm:$0xff]
      %v266 = vld [vmem:[#allocation2 + $0xe0] sm:$0xff]
      %v267 = vld [vmem:[#allocation2 + $0xe8] sm:$0xff]
      %v268 = vld [vmem:[#allocation2 + $0xf0] sm:$0xff]
      %v269 = vld [vmem:[#allocation2 + $0xf8] sm:$0xff]
      %v270 = vld [vmem:[#allocation2 + $0x100] sm:$0xff]
      %v271 = vld [vmem:[#allocation2 + $0x108] sm:$0xff]
      %v272 = vld [vmem:[#allocation2 + $0x110] sm:$0xff]
      %v273 = vld [vmem:[#allocation2 + $0x118] sm:$0xff]
      %v274 = vld [vmem:[#allocation2 + $0x120] sm:$0xff]
      %v275 = vld [vmem:[#allocation2 + $0x128] sm:$0xff]
      %v276 = vld [vmem:[#allocation2 + $0x130] sm:$0xff]
      %v277 = vld [vmem:[#allocation2 + $0x138] sm:$0xff]
      %v278 = vld [vmem:[#allocation2 + $0x140] sm:$0xff]
      %v279 = vld [vmem:[#allocation2 + $0x148] sm:$0xff]
      %v280 = vld [vmem:[#allocation2 + $0x150] sm:$0xff]
      %v281 = vld [vmem:[#allocation2 + $0x158] sm:$0xff]
      %v282 = vld [vmem:[#allocation2 + $0x160] sm:$0xff]
      %v283 = vld [vmem:[#allocation2 + $0x168] sm:$0xff]
      %v284 = vld [vmem:[#allocation2 + $0x170] sm:$0xff]
      %v285 = vld [vmem:[#allocation2 + $0x178] sm:$0xff]
      %v286 = vld [vmem:[#allocation2 + $0x180] sm:$0xff]
      %v287 = vld [vmem:[#allocation2 + $0x188] sm:$0xff]
      %v288 = vld [vmem:[#allocation2 + $0x190] sm:$0xff]
      %v289 = vld [vmem:[#allocation2 + $0x198] sm:$0xff]
      %v290 = vld [vmem:[#allocation2 + $0x1a0] sm:$0xff]
      %v291 = vld [vmem:[#allocation2 + $0x1a8] sm:$0xff]
      %v292 = vld [vmem:[#allocation2 + $0x1b0] sm:$0xff]
      %v293 = vld [vmem:[#allocation2 + $0x1b8] sm:$0xff]
      %v294 = vld [vmem:[#allocation2 + $0x1c0] sm:$0xff]
      %v295 = vld [vmem:[#allocation2 + $0x1c8] sm:$0xff]
      %v296 = vld [vmem:[#allocation2 + $0x1d0] sm:$0xff]
      %v297 = vld [vmem:[#allocation2 + $0x1d8] sm:$0xff]
      %v298 = vld [vmem:[#allocation2 + $0x1e0] sm:$0xff]
      %v299 = vld [vmem:[#allocation2 + $0x1e8] sm:$0xff]
      %v300 = vld [vmem:[#allocation2 + $0x1f0] sm:$0xff]
      %v301 = vld [vmem:[#allocation2 + $0x1f8] sm:$0xff]
      %v302 = vld [vmem:[#allocation4] sm:$0xff]
      %v303 = vld [vmem:[#allocation4 + $0x8] sm:$0xff]
      %v304 = vld [vmem:[#allocation4 + $0x10] sm:$0xff]
      %v305 = vld [vmem:[#allocation4 + $0x18] sm:$0xff]
      %v306 = vld [vmem:[#allocation4 + $0x20] sm:$0xff]
      %v307 = vld [vmem:[#allocation4 + $0x28] sm:$0xff]
      %v308 = vld [vmem:[#allocation4 + $0x30] sm:$0xff]
      %v309 = vld [vmem:[#allocation4 + $0x38] sm:$0xff]
      %v310 = vld [vmem:[#allocation4 + $0x40] sm:$0xff]
      %v311 = vld [vmem:[#allocation4 + $0x48] sm:$0xff]
      %v312 = vld [vmem:[#allocation4 + $0x50] sm:$0xff]
      %v313 = vld [vmem:[#allocation4 + $0x58] sm:$0xff]
      %v314 = vld [vmem:[#allocation4 + $0x60] sm:$0xff]
      %v315 = vld [vmem:[#allocation4 + $0x68] sm:$0xff]
      %v316 = vld [vmem:[#allocation4 + $0x70] sm:$0xff]
      %v317 = vld [vmem:[#allocation4 + $0x78] sm:$0xff]
      %v318 = vld [vmem:[#allocation4 + $0x80] sm:$0xff]
      %v319 = vld [vmem:[#allocation4 + $0x88] sm:$0xff]
      %v320 = vld [vmem:[#allocation4 + $0x90] sm:$0xff]
      %v321 = vld [vmem:[#allocation4 + $0x98] sm:$0xff]
      %v322 = vld [vmem:[#allocation4 + $0xa0] sm:$0xff]
      %v323 = vld [vmem:[#allocation4 + $0xa8] sm:$0xff]
      %v324 = vld [vmem:[#allocation4 + $0xb0] sm:$0xff]
      %v325 = vld [vmem:[#allocation4 + $0xb8] sm:$0xff]
      %v326 = vld [vmem:[#allocation4 + $0xc0] sm:$0xff]
      %v327 = vld [vmem:[#allocation4 + $0xc8] sm:$0xff]
      %v328 = vld [vmem:[#allocation4 + $0xd0] sm:$0xff]
      %v329 = vld [vmem:[#allocation4 + $0xd8] sm:$0xff]
      %v330 = vld [vmem:[#allocation4 + $0xe0] sm:$0xff]
      %v331 = vld [vmem:[#allocation4 + $0xe8] sm:$0xff]
      %v332 = vld [vmem:[#allocation4 + $0xf0] sm:$0xff]
      %v333 = vld [vmem:[#allocation4 + $0xf8] sm:$0xff]
      %v334 = vld [vmem:[#allocation4 + $0x100] sm:$0xff]
      %v335 = vld [vmem:[#allocation4 + $0x108] sm:$0xff]
      %v336 = vld [vmem:[#allocation4 + $0x110] sm:$0xff]
      %v337 = vld [vmem:[#allocation4 + $0x118] sm:$0xff]
      %v338 = vld [vmem:[#allocation4 + $0x120] sm:$0xff]
      %v339 = vld [vmem:[#allocation4 + $0x128] sm:$0xff]
      %v340 = vld [vmem:[#allocation4 + $0x130] sm:$0xff]
      %v341 = vld [vmem:[#allocation4 + $0x138] sm:$0xff]
      %v342 = vld [vmem:[#allocation4 + $0x140] sm:$0xff]
      %v343 = vld [vmem:[#allocation4 + $0x148] sm:$0xff]
      %v344 = vld [vmem:[#allocation4 + $0x150] sm:$0xff]
      %v345 = vld [vmem:[#allocation4 + $0x158] sm:$0xff]
      %v346 = vld [vmem:[#allocation4 + $0x160] sm:$0xff]
      %v347 = vld [vmem:[#allocation4 + $0x168] sm:$0xff]
      %v348 = vld [vmem:[#allocation4 + $0x170] sm:$0xff]
      %v349 = vld [vmem:[#allocation4 + $0x178] sm:$0xff]
      %v350 = vld [vmem:[#allocation4 + $0x180] sm:$0xff]
      %v351 = vld [vmem:[#allocation4 + $0x188] sm:$0xff]
      %v352 = vld [vmem:[#allocation4 + $0x190] sm:$0xff]
      %v353 = vld [vmem:[#allocation4 + $0x198] sm:$0xff]
      %v354 = vld [vmem:[#allocation4 + $0x1a0] sm:$0xff]
      %v355 = vld [vmem:[#allocation4 + $0x1a8] sm:$0xff]
      %v356 = vld [vmem:[#allocation4 + $0x1b0] sm:$0xff]
      %v357 = vld [vmem:[#allocation4 + $0x1b8] sm:$0xff]
      %v358 = vld [vmem:[#allocation4 + $0x1c0] sm:$0xff]
      %v359 = vld [vmem:[#allocation4 + $0x1c8] sm:$0xff]
      %v360 = vld [vmem:[#allocation4 + $0x1d0] sm:$0xff]
      %v361 = vld [vmem:[#allocation4 + $0x1d8] sm:$0xff]
      %v362 = vld [vmem:[#allocation4 + $0x1e0] sm:$0xff]
      %v363 = vld [vmem:[#allocation4 + $0x1e8] sm:$0xff]
      %v364 = vld [vmem:[#allocation4 + $0x1f0] sm:$0xff]
      %v365 = vld [vmem:[#allocation4 + $0x1f8] sm:$0xff]
      %v366 = vld [vmem:[%s9] sm:$0xf]
      %367 = vmatpush.msra.mxu0 %v362
      %368 = vmatpush.msra.mxu0 %v358
      %369 = vmatpush.msra.mxu0 %v354
      %370 = vmatpush.msra.mxu0 %v350
      %371 = vmatpush.msra.mxu0 %v346
      %372 = vmatpush.msra.mxu0 %v342
      %373 = vmatpush.msra.mxu0 %v338
      %374 = vmatpush.msra.mxu0 %v334
      %375 = vmatpush.msra.mxu0 %v330
      %376 = vmatpush.msra.mxu0 %v326
      %377 = vmatpush.msra.mxu0 %v322
      %378 = vmatpush.msra.mxu0 %v318
      %379 = vmatpush.msra.mxu0 %v314
      %380 = vmatpush.msra.mxu0 %v310
      %381 = vmatpush.msra.mxu0 %v306
      %382 = vmatpush.msra.mxu0 %v302
      %383 = vmatmul.f32.gmra.mxu0 %v79
      %v384 = vpop.f32.mrf.mxu0
      %v385 = vadd.f32 0.0, %v384
      %386 = vdwg.mxu0
      %387 = vmatpush.msra.mxu0 %v363
      %388 = vmatpush.msra.mxu0 %v359
      %389 = vmatpush.msra.mxu0 %v355
      %390 = vmatpush.msra.mxu0 %v351
      %391 = vmatpush.msra.mxu0 %v347
      %392 = vmatpush.msra.mxu0 %v343
      %393 = vmatpush.msra.mxu0 %v339
      %394 = vmatpush.msra.mxu0 %v335
      %395 = vmatpush.msra.mxu0 %v331
      %396 = vmatpush.msra.mxu0 %v327
      %397 = vmatpush.msra.mxu0 %v323
      %398 = vmatpush.msra.mxu0 %v319
      %399 = vmatpush.msra.mxu0 %v315
      %400 = vmatpush.msra.mxu0 %v311
      %401 = vmatpush.msra.mxu0 %v307
      %402 = vmatpush.msra.mxu0 %v303
      %403 = vmatmul.f32.gmra.mxu0 %v79
      %v404 = vpop.f32.mrf.mxu0
      %v405 = vadd.f32 0.0, %v404
      %406 = vdwg.mxu0
      %407 = vmatpush.msra.mxu0 %v364
      %408 = vmatpush.msra.mxu0 %v360
      %409 = vmatpush.msra.mxu0 %v356
      %410 = vmatpush.msra.mxu0 %v352
      %411 = vmatpush.msra.mxu0 %v348
      %412 = vmatpush.msra.mxu0 %v344
      %413 = vmatpush.msra.mxu0 %v340
      %414 = vmatpush.msra.mxu0 %v336
      %415 = vmatpush.msra.mxu0 %v332
      %416 = vmatpush.msra.mxu0 %v328
      %417 = vmatpush.msra.mxu0 %v324
      %418 = vmatpush.msra.mxu0 %v320
      %419 = vmatpush.msra.mxu0 %v316
      %420 = vmatpush.msra.mxu0 %v312
      %421 = vmatpush.msra.mxu0 %v308
      %422 = vmatpush.msra.mxu0 %v304
      %423 = vmatmul.f32.gmra.mxu0 %v79
      %v424 = vpop.f32.mrf.mxu0
      %v425 = vadd.f32 0.0, %v424
      %426 = vdwg.mxu0
      %427 = vmatpush.msra.mxu0 %v365
      %428 = vmatpush.msra.mxu0 %v361
      %429 = vmatpush.msra.mxu0 %v357
      %430 = vmatpush.msra.mxu0 %v353
      %431 = vmatpush.msra.mxu0 %v349
      %432 = vmatpush.msra.mxu0 %v345
      %433 = vmatpush.msra.mxu0 %v341
      %434 = vmatpush.msra.mxu0 %v337
      %435 = vmatpush.msra.mxu0 %v333
      %436 = vmatpush.msra.mxu0 %v329
      %437 = vmatpush.msra.mxu0 %v325
      %438 = vmatpush.msra.mxu0 %v321
      %439 = vmatpush.msra.mxu0 %v317
      %440 = vmatpush.msra.mxu0 %v313
      %441 = vmatpush.msra.mxu0 %v309
      %442 = vmatpush.msra.mxu0 %v305
      %443 = vmatmul.f32.gmra.mxu0 %v79
      %v444 = vpop.f32.mrf.mxu0
      %v445 = vadd.f32 0.0, %v444
      %446 = vdwg.mxu0
      %447 = vmatpush.msra.mxu0 %v298
      %448 = vmatpush.msra.mxu0 %v294
      %449 = vmatpush.msra.mxu0 %v290
      %450 = vmatpush.msra.mxu0 %v286
      %451 = vmatpush.msra.mxu0 %v282
      %452 = vmatpush.msra.mxu0 %v278
      %453 = vmatpush.msra.mxu0 %v274
      %454 = vmatpush.msra.mxu0 %v270
      %455 = vmatpush.msra.mxu0 %v266
      %456 = vmatpush.msra.mxu0 %v262
      %457 = vmatpush.msra.mxu0 %v258
      %458 = vmatpush.msra.mxu0 %v254
      %459 = vmatpush.msra.mxu0 %v250
      %460 = vmatpush.msra.mxu0 %v246
      %461 = vmatpush.msra.mxu0 %v242
      %462 = vmatpush.msra.mxu0 %v238
      %463 = vmatmul.f32.gmra.mxu0 %v237
      %v464 = vpop.f32.mrf.mxu0
      %v465 = vadd.f32 %v385, %v464
      %466 = vdwg.mxu0
      %467 = vmatpush.msra.mxu0 %v299
      %468 = vmatpush.msra.mxu0 %v295
      %469 = vmatpush.msra.mxu0 %v291
      %470 = vmatpush.msra.mxu0 %v287
      %471 = vmatpush.msra.mxu0 %v283
      %472 = vmatpush.msra.mxu0 %v279
      %473 = vmatpush.msra.mxu0 %v275
      %474 = vmatpush.msra.mxu0 %v271
      %475 = vmatpush.msra.mxu0 %v267
      %476 = vmatpush.msra.mxu0 %v263
      %477 = vmatpush.msra.mxu0 %v259
      %478 = vmatpush.msra.mxu0 %v255
      %479 = vmatpush.msra.mxu0 %v251
      %480 = vmatpush.msra.mxu0 %v247
      %481 = vmatpush.msra.mxu0 %v243
      %482 = vmatpush.msra.mxu0 %v239
      %483 = vmatmul.f32.gmra.mxu0 %v237
      %v484 = vpop.f32.mrf.mxu0
      %v485 = vadd.f32 %v405, %v484
      %486 = vdwg.mxu0
      %487 = vmatpush.msra.mxu0 %v300
      %488 = vmatpush.msra.mxu0 %v296
      %489 = vmatpush.msra.mxu0 %v292
      %490 = vmatpush.msra.mxu0 %v288
      %491 = vmatpush.msra.mxu0 %v284
      %492 = vmatpush.msra.mxu0 %v280
      %493 = vmatpush.msra.mxu0 %v276
      %494 = vmatpush.msra.mxu0 %v272
      %495 = vmatpush.msra.mxu0 %v268
      %496 = vmatpush.msra.mxu0 %v264
      %497 = vmatpush.msra.mxu0 %v260
      %498 = vmatpush.msra.mxu0 %v256
      %499 = vmatpush.msra.mxu0 %v252
      %500 = vmatpush.msra.mxu0 %v248
      %501 = vmatpush.msra.mxu0 %v244
      %502 = vmatpush.msra.mxu0 %v240
      %503 = vmatmul.f32.gmra.mxu0 %v237
      %v504 = vpop.f32.mrf.mxu0
      %v505 = vadd.f32 %v425, %v504
      %506 = vdwg.mxu0
      %507 = vmatpush.msra.mxu0 %v301
      %508 = vmatpush.msra.mxu0 %v297
      %509 = vmatpush.msra.mxu0 %v293
      %510 = vmatpush.msra.mxu0 %v289
      %511 = vmatpush.msra.mxu0 %v285
      %512 = vmatpush.msra.mxu0 %v281
      %513 = vmatpush.msra.mxu0 %v277
      %514 = vmatpush.msra.mxu0 %v273
      %515 = vmatpush.msra.mxu0 %v269
      %516 = vmatpush.msra.mxu0 %v265
      %517 = vmatpush.msra.mxu0 %v261
      %518 = vmatpush.msra.mxu0 %v257
      %519 = vmatpush.msra.mxu0 %v253
      %520 = vmatpush.msra.mxu0 %v249
      %521 = vmatpush.msra.mxu0 %v245
      %522 = vmatpush.msra.mxu0 %v241
      %523 = vmatmul.f32.gmra.mxu0 %v237
      %v524 = vpop.f32.mrf.mxu0
      %v525 = vadd.f32 %v445, %v524
      %526 = vdwg.mxu0
      %v528 = vperm.slane %v366, 0
      %v529 = vperm.slane %v366, 1
      %v530 = vperm.slane %v366, 2
      %v531 = vperm.slane %v366, 3
      %v536 = vadd.f32 %v465, %v528
      %v537 = vadd.f32 %v485, %v529
      %v538 = vadd.f32 %v505, %v530
      %v539 = vadd.f32 %v525, %v531
      %v540 = vxor.u32 %v536, 2147483648
      %v541 = vxor.u32 %v537, 2147483648
      %v542 = vxor.u32 %v538, 2147483648
      %v543 = vmul.f32 %v540, 1.442695
      %v544 = vpow.pop %v543
      %v545 = vmul.f32 %v541, 1.442695
      %v546 = vpow.pop %v545
      %v547 = vmul.f32 %v542, 1.442695
      %v548 = vpow.pop %v547
      %v549 = vadd.f32 %v544, 1.0
      %v550 = vadd.f32 %v546, 1.0
      %v551 = vadd.f32 %v548, 1.0
      %v552 = vrcp.pop %v549
      %v553 = vmul.f32 %v549, %v552
      %v554 = vsub.f32 1.0, %v553
      %v555 = vmul.f32 %v552, %v554
      %v556 = vadd.f32 %v552, %v555
      %vm557 = vweird.f32 %v549
      %vm558 = vweird.f32 %v552
      %vm559 = vmor %vm557, %vm558
      %v560 = vsel %vm559, %v552, %v556
      %v561 = vand.u32 2147483647, %v549
      %vm562 = vcmp.eq.f32.partialorder %v561, 8.507059e+37
      %v563 = vand.u32 %v549, 2147483648
      %v564 = vor.u32 1.1754944e-38, %v563
      %v565 = vsel %vm562, %v564, %v560
      %v566 = vmul.f32 1.0, %v565
      %v567 = vrcp.pop %v550
      %v568 = vmul.f32 %v550, %v567
      %v569 = vsub.f32 1.0, %v568
      %v570 = vmul.f32 %v567, %v569
      %v571 = vadd.f32 %v567, %v570
      %vm572 = vweird.f32 %v550
      %vm573 = vweird.f32 %v567
      %vm574 = vmor %vm572, %vm573
      %v575 = vsel %vm574, %v567, %v571
      %v576 = vand.u32 2147483647, %v550
      %vm577 = vcmp.eq.f32.partialorder %v576, 8.507059e+37
      %v578 = vand.u32 %v550, 2147483648
      %v579 = vor.u32 1.1754944e-38, %v578
      %v580 = vsel %vm577, %v579, %v575
      %v581 = vmul.f32 1.0, %v580
      %v582 = vrcp.pop %v551
      %v583 = vmul.f32 %v551, %v582
      %v584 = vsub.f32 1.0, %v583
      %v585 = vmul.f32 %v582, %v584
      %v586 = vadd.f32 %v582, %v585
      %vm587 = vweird.f32 %v551
      %vm588 = vweird.f32 %v582
      %vm589 = vmor %vm587, %vm588
      %v590 = vsel %vm589, %v582, %v586
      %v591 = vand.u32 2147483647, %v551
      %vm592 = vcmp.eq.f32.partialorder %v591, 8.507059e+37
      %v593 = vand.u32 %v551, 2147483648
      %v594 = vor.u32 1.1754944e-38, %v593
      %v595 = vsel %vm592, %v594, %v590
      %v596 = vmul.f32 1.0, %v595
      %v597 = vtanh.pop %v539
      %v598 = vmul.f32 %v581, %v81
      %v599 = vmul.f32 %v566, %v597
      %v600 = vadd.f32 %v598, %v599
      %v601 = vtanh.pop %v600
      %v602 = vmul.f32 %v596, %v601
      %s603 = scalar_lea.vmem [#allocation2], 512
      %v604 = vld [vmem:[%s603] sm:$0xff]
      %v605 = vld [vmem:[%s603 + $0x8] sm:$0xff]
      %v606 = vld [vmem:[%s603 + $0x10] sm:$0xff]
      %v607 = vld [vmem:[%s603 + $0x18] sm:$0xff]
      %v608 = vld [vmem:[%s603 + $0x20] sm:$0xff]
      %v609 = vld [vmem:[%s603 + $0x28] sm:$0xff]
      %v610 = vld [vmem:[%s603 + $0x30] sm:$0xff]
      %v611 = vld [vmem:[%s603 + $0x38] sm:$0xff]
      %v612 = vld [vmem:[%s603 + $0x40] sm:$0xff]
      %v613 = vld [vmem:[%s603 + $0x48] sm:$0xff]
      %v614 = vld [vmem:[%s603 + $0x50] sm:$0xff]
      %v615 = vld [vmem:[%s603 + $0x58] sm:$0xff]
      %v616 = vld [vmem:[%s603 + $0x60] sm:$0xff]
      %v617 = vld [vmem:[%s603 + $0x68] sm:$0xff]
      %v618 = vld [vmem:[%s603 + $0x70] sm:$0xff]
      %v619 = vld [vmem:[%s603 + $0x78] sm:$0xff]
      %v620 = vld [vmem:[%s603 + $0x80] sm:$0xff]
      %v621 = vld [vmem:[%s603 + $0x88] sm:$0xff]
      %v622 = vld [vmem:[%s603 + $0x90] sm:$0xff]
      %v623 = vld [vmem:[%s603 + $0x98] sm:$0xff]
      %v624 = vld [vmem:[%s603 + $0xa0] sm:$0xff]
      %v625 = vld [vmem:[%s603 + $0xa8] sm:$0xff]
      %v626 = vld [vmem:[%s603 + $0xb0] sm:$0xff]
      %v627 = vld [vmem:[%s603 + $0xb8] sm:$0xff]
      %v628 = vld [vmem:[%s603 + $0xc0] sm:$0xff]
      %v629 = vld [vmem:[%s603 + $0xc8] sm:$0xff]
      %v630 = vld [vmem:[%s603 + $0xd0] sm:$0xff]
      %v631 = vld [vmem:[%s603 + $0xd8] sm:$0xff]
      %v632 = vld [vmem:[%s603 + $0xe0] sm:$0xff]
      %v633 = vld [vmem:[%s603 + $0xe8] sm:$0xff]
      %v634 = vld [vmem:[%s603 + $0xf0] sm:$0xff]
      %v635 = vld [vmem:[%s603 + $0xf8] sm:$0xff]
      %v636 = vld [vmem:[%s603 + $0x100] sm:$0xff]
      %v637 = vld [vmem:[%s603 + $0x108] sm:$0xff]
      %v638 = vld [vmem:[%s603 + $0x110] sm:$0xff]
      %v639 = vld [vmem:[%s603 + $0x118] sm:$0xff]
      %v640 = vld [vmem:[%s603 + $0x120] sm:$0xff]
      %v641 = vld [vmem:[%s603 + $0x128] sm:$0xff]
      %v642 = vld [vmem:[%s603 + $0x130] sm:$0xff]
      %v643 = vld [vmem:[%s603 + $0x138] sm:$0xff]
      %v644 = vld [vmem:[%s603 + $0x140] sm:$0xff]
      %v645 = vld [vmem:[%s603 + $0x148] sm:$0xff]
      %v646 = vld [vmem:[%s603 + $0x150] sm:$0xff]
      %v647 = vld [vmem:[%s603 + $0x158] sm:$0xff]
      %v648 = vld [vmem:[%s603 + $0x160] sm:$0xff]
      %v649 = vld [vmem:[%s603 + $0x168] sm:$0xff]
      %v650 = vld [vmem:[%s603 + $0x170] sm:$0xff]
      %v651 = vld [vmem:[%s603 + $0x178] sm:$0xff]
      %v652 = vld [vmem:[%s603 + $0x180] sm:$0xff]
      %v653 = vld [vmem:[%s603 + $0x188] sm:$0xff]
      %v654 = vld [vmem:[%s603 + $0x190] sm:$0xff]
      %v655 = vld [vmem:[%s603 + $0x198] sm:$0xff]
      %v656 = vld [vmem:[%s603 + $0x1a0] sm:$0xff]
      %v657 = vld [vmem:[%s603 + $0x1a8] sm:$0xff]
      %v658 = vld [vmem:[%s603 + $0x1b0] sm:$0xff]
      %v659 = vld [vmem:[%s603 + $0x1b8] sm:$0xff]
      %v660 = vld [vmem:[%s603 + $0x1c0] sm:$0xff]
      %v661 = vld [vmem:[%s603 + $0x1c8] sm:$0xff]
      %v662 = vld [vmem:[%s603 + $0x1d0] sm:$0xff]
      %v663 = vld [vmem:[%s603 + $0x1d8] sm:$0xff]
      %v664 = vld [vmem:[%s603 + $0x1e0] sm:$0xff]
      %v665 = vld [vmem:[%s603 + $0x1e8] sm:$0xff]
      %v666 = vld [vmem:[%s603 + $0x1f0] sm:$0xff]
      %v667 = vld [vmem:[%s603 + $0x1f8] sm:$0xff]
      %s668 = scalar_lea.vmem [#allocation4], 512
      %v669 = vld [vmem:[%s668] sm:$0xff]
      %v670 = vld [vmem:[%s668 + $0x8] sm:$0xff]
      %v671 = vld [vmem:[%s668 + $0x10] sm:$0xff]
      %v672 = vld [vmem:[%s668 + $0x18] sm:$0xff]
      %v673 = vld [vmem:[%s668 + $0x20] sm:$0xff]
      %v674 = vld [vmem:[%s668 + $0x28] sm:$0xff]
      %v675 = vld [vmem:[%s668 + $0x30] sm:$0xff]
      %v676 = vld [vmem:[%s668 + $0x38] sm:$0xff]
      %v677 = vld [vmem:[%s668 + $0x40] sm:$0xff]
      %v678 = vld [vmem:[%s668 + $0x48] sm:$0xff]
      %v679 = vld [vmem:[%s668 + $0x50] sm:$0xff]
      %v680 = vld [vmem:[%s668 + $0x58] sm:$0xff]
      %v681 = vld [vmem:[%s668 + $0x60] sm:$0xff]
      %v682 = vld [vmem:[%s668 + $0x68] sm:$0xff]
      %v683 = vld [vmem:[%s668 + $0x70] sm:$0xff]
      %v684 = vld [vmem:[%s668 + $0x78] sm:$0xff]
      %v685 = vld [vmem:[%s668 + $0x80] sm:$0xff]
      %v686 = vld [vmem:[%s668 + $0x88] sm:$0xff]
      %v687 = vld [vmem:[%s668 + $0x90] sm:$0xff]
      %v688 = vld [vmem:[%s668 + $0x98] sm:$0xff]
      %v689 = vld [vmem:[%s668 + $0xa0] sm:$0xff]
      %v690 = vld [vmem:[%s668 + $0xa8] sm:$0xff]
      %v691 = vld [vmem:[%s668 + $0xb0] sm:$0xff]
      %v692 = vld [vmem:[%s668 + $0xb8] sm:$0xff]
      %v693 = vld [vmem:[%s668 + $0xc0] sm:$0xff]
      %v694 = vld [vmem:[%s668 + $0xc8] sm:$0xff]
      %v695 = vld [vmem:[%s668 + $0xd0] sm:$0xff]
      %v696 = vld [vmem:[%s668 + $0xd8] sm:$0xff]
      %v697 = vld [vmem:[%s668 + $0xe0] sm:$0xff]
      %v698 = vld [vmem:[%s668 + $0xe8] sm:$0xff]
      %v699 = vld [vmem:[%s668 + $0xf0] sm:$0xff]
      %v700 = vld [vmem:[%s668 + $0xf8] sm:$0xff]
      %v701 = vld [vmem:[%s668 + $0x100] sm:$0xff]
      %v702 = vld [vmem:[%s668 + $0x108] sm:$0xff]
      %v703 = vld [vmem:[%s668 + $0x110] sm:$0xff]
      %v704 = vld [vmem:[%s668 + $0x118] sm:$0xff]
      %v705 = vld [vmem:[%s668 + $0x120] sm:$0xff]
      %v706 = vld [vmem:[%s668 + $0x128] sm:$0xff]
      %v707 = vld [vmem:[%s668 + $0x130] sm:$0xff]
      %v708 = vld [vmem:[%s668 + $0x138] sm:$0xff]
      %v709 = vld [vmem:[%s668 + $0x140] sm:$0xff]
      %v710 = vld [vmem:[%s668 + $0x148] sm:$0xff]
      %v711 = vld [vmem:[%s668 + $0x150] sm:$0xff]
      %v712 = vld [vmem:[%s668 + $0x158] sm:$0xff]
      %v713 = vld [vmem:[%s668 + $0x160] sm:$0xff]
      %v714 = vld [vmem:[%s668 + $0x168] sm:$0xff]
      %v715 = vld [vmem:[%s668 + $0x170] sm:$0xff]
      %v716 = vld [vmem:[%s668 + $0x178] sm:$0xff]
      %v717 = vld [vmem:[%s668 + $0x180] sm:$0xff]
      %v718 = vld [vmem:[%s668 + $0x188] sm:$0xff]
      %v719 = vld [vmem:[%s668 + $0x190] sm:$0xff]
      %v720 = vld [vmem:[%s668 + $0x198] sm:$0xff]
      %v721 = vld [vmem:[%s668 + $0x1a0] sm:$0xff]
      %v722 = vld [vmem:[%s668 + $0x1a8] sm:$0xff]
      %v723 = vld [vmem:[%s668 + $0x1b0] sm:$0xff]
      %v724 = vld [vmem:[%s668 + $0x1b8] sm:$0xff]
      %v725 = vld [vmem:[%s668 + $0x1c0] sm:$0xff]
      %v726 = vld [vmem:[%s668 + $0x1c8] sm:$0xff]
      %v727 = vld [vmem:[%s668 + $0x1d0] sm:$0xff]
      %v728 = vld [vmem:[%s668 + $0x1d8] sm:$0xff]
      %v729 = vld [vmem:[%s668 + $0x1e0] sm:$0xff]
      %v730 = vld [vmem:[%s668 + $0x1e8] sm:$0xff]
      %v731 = vld [vmem:[%s668 + $0x1f0] sm:$0xff]
      %v732 = vld [vmem:[%s668 + $0x1f8] sm:$0xff]
      %s733 = scalar_lea.vmem %s9, 4
      %v734 = vld [vmem:[%s733] sm:$0xf]
      %735 = vmatpush.msra.mxu0 %v729
      %736 = vmatpush.msra.mxu0 %v725
      %737 = vmatpush.msra.mxu0 %v721
      %738 = vmatpush.msra.mxu0 %v717
      %739 = vmatpush.msra.mxu0 %v713
      %740 = vmatpush.msra.mxu0 %v709
      %741 = vmatpush.msra.mxu0 %v705
      %742 = vmatpush.msra.mxu0 %v701
      %743 = vmatpush.msra.mxu0 %v697
      %744 = vmatpush.msra.mxu0 %v693
      %745 = vmatpush.msra.mxu0 %v689
      %746 = vmatpush.msra.mxu0 %v685
      %747 = vmatpush.msra.mxu0 %v681
      %748 = vmatpush.msra.mxu0 %v677
      %749 = vmatpush.msra.mxu0 %v673
      %750 = vmatpush.msra.mxu0 %v669
      %751 = vmatmul.f32.gmra.mxu0 %v80
      %v752 = vpop.f32.mrf.mxu0
      %v753 = vadd.f32 0.0, %v752
      %754 = vdwg.mxu0
      %755 = vmatpush.msra.mxu0 %v730
      %756 = vmatpush.msra.mxu0 %v726
      %757 = vmatpush.msra.mxu0 %v722
      %758 = vmatpush.msra.mxu0 %v718
      %759 = vmatpush.msra.mxu0 %v714
      %760 = vmatpush.msra.mxu0 %v710
      %761 = vmatpush.msra.mxu0 %v706
      %762 = vmatpush.msra.mxu0 %v702
      %763 = vmatpush.msra.mxu0 %v698
      %764 = vmatpush.msra.mxu0 %v694
      %765 = vmatpush.msra.mxu0 %v690
      %766 = vmatpush.msra.mxu0 %v686
      %767 = vmatpush.msra.mxu0 %v682
      %768 = vmatpush.msra.mxu0 %v678
      %769 = vmatpush.msra.mxu0 %v674
      %770 = vmatpush.msra.mxu0 %v670
      %771 = vmatmul.f32.gmra.mxu0 %v80
      %v772 = vpop.f32.mrf.mxu0
      %v773 = vadd.f32 0.0, %v772
      %774 = vdwg.mxu0
      %775 = vmatpush.msra.mxu0 %v731
      %776 = vmatpush.msra.mxu0 %v727
      %777 = vmatpush.msra.mxu0 %v723
      %778 = vmatpush.msra.mxu0 %v719
      %779 = vmatpush.msra.mxu0 %v715
      %780 = vmatpush.msra.mxu0 %v711
      %781 = vmatpush.msra.mxu0 %v707
      %782 = vmatpush.msra.mxu0 %v703
      %783 = vmatpush.msra.mxu0 %v699
      %784 = vmatpush.msra.mxu0 %v695
      %785 = vmatpush.msra.mxu0 %v691
      %786 = vmatpush.msra.mxu0 %v687
      %787 = vmatpush.msra.mxu0 %v683
      %788 = vmatpush.msra.mxu0 %v679
      %789 = vmatpush.msra.mxu0 %v675
      %790 = vmatpush.msra.mxu0 %v671
      %791 = vmatmul.f32.gmra.mxu0 %v80
      %v792 = vpop.f32.mrf.mxu0
      %v793 = vadd.f32 0.0, %v792
      %794 = vdwg.mxu0
      %795 = vmatpush.msra.mxu0 %v732
      %796 = vmatpush.msra.mxu0 %v728
      %797 = vmatpush.msra.mxu0 %v724
      %798 = vmatpush.msra.mxu0 %v720
      %799 = vmatpush.msra.mxu0 %v716
      %800 = vmatpush.msra.mxu0 %v712
      %801 = vmatpush.msra.mxu0 %v708
      %802 = vmatpush.msra.mxu0 %v704
      %803 = vmatpush.msra.mxu0 %v700
      %804 = vmatpush.msra.mxu0 %v696
      %805 = vmatpush.msra.mxu0 %v692
      %806 = vmatpush.msra.mxu0 %v688
      %807 = vmatpush.msra.mxu0 %v684
      %808 = vmatpush.msra.mxu0 %v680
      %809 = vmatpush.msra.mxu0 %v676
      %810 = vmatpush.msra.mxu0 %v672
      %811 = vmatmul.f32.gmra.mxu0 %v80
      %v812 = vpop.f32.mrf.mxu0
      %v813 = vadd.f32 0.0, %v812
      %814 = vdwg.mxu0
      %815 = vmatpush.msra.mxu0 %v664
      %816 = vmatpush.msra.mxu0 %v660
      %817 = vmatpush.msra.mxu0 %v656
      %818 = vmatpush.msra.mxu0 %v652
      %819 = vmatpush.msra.mxu0 %v648
      %820 = vmatpush.msra.mxu0 %v644
      %821 = vmatpush.msra.mxu0 %v640
      %822 = vmatpush.msra.mxu0 %v636
      %823 = vmatpush.msra.mxu0 %v632
      %824 = vmatpush.msra.mxu0 %v628
      %825 = vmatpush.msra.mxu0 %v624
      %826 = vmatpush.msra.mxu0 %v620
      %827 = vmatpush.msra.mxu0 %v616
      %828 = vmatpush.msra.mxu0 %v612
      %829 = vmatpush.msra.mxu0 %v608
      %830 = vmatpush.msra.mxu0 %v604
      %831 = vmatmul.f32.gmra.mxu0 %v602
      %v832 = vpop.f32.mrf.mxu0
      %v833 = vadd.f32 %v753, %v832
      %834 = vdwg.mxu0
      %835 = vmatpush.msra.mxu0 %v665
      %836 = vmatpush.msra.mxu0 %v661
      %837 = vmatpush.msra.mxu0 %v657
      %838 = vmatpush.msra.mxu0 %v653
      %839 = vmatpush.msra.mxu0 %v649
      %840 = vmatpush.msra.mxu0 %v645
      %841 = vmatpush.msra.mxu0 %v641
      %842 = vmatpush.msra.mxu0 %v637
      %843 = vmatpush.msra.mxu0 %v633
      %844 = vmatpush.msra.mxu0 %v629
      %845 = vmatpush.msra.mxu0 %v625
      %846 = vmatpush.msra.mxu0 %v621
      %847 = vmatpush.msra.mxu0 %v617
      %848 = vmatpush.msra.mxu0 %v613
      %849 = vmatpush.msra.mxu0 %v609
      %850 = vmatpush.msra.mxu0 %v605
      %851 = vmatmul.f32.gmra.mxu0 %v602
      %v852 = vpop.f32.mrf.mxu0
      %v853 = vadd.f32 %v773, %v852
      %854 = vdwg.mxu0
      %855 = vmatpush.msra.mxu0 %v666
      %856 = vmatpush.msra.mxu0 %v662
      %857 = vmatpush.msra.mxu0 %v658
      %858 = vmatpush.msra.mxu0 %v654
      %859 = vmatpush.msra.mxu0 %v650
      %860 = vmatpush.msra.mxu0 %v646
      %861 = vmatpush.msra.mxu0 %v642
      %862 = vmatpush.msra.mxu0 %v638
      %863 = vmatpush.msra.mxu0 %v634
      %864 = vmatpush.msra.mxu0 %v630
      %865 = vmatpush.msra.mxu0 %v626
      %866 = vmatpush.msra.mxu0 %v622
      %867 = vmatpush.msra.mxu0 %v618
      %868 = vmatpush.msra.mxu0 %v614
      %869 = vmatpush.msra.mxu0 %v610
      %870 = vmatpush.msra.mxu0 %v606
      %871 = vmatmul.f32.gmra.mxu0 %v602
      %v872 = vpop.f32.mrf.mxu0
      %v873 = vadd.f32 %v793, %v872
      %874 = vdwg.mxu0
      %875 = vmatpush.msra.mxu0 %v667
      %876 = vmatpush.msra.mxu0 %v663
      %877 = vmatpush.msra.mxu0 %v659
      %878 = vmatpush.msra.mxu0 %v655
      %879 = vmatpush.msra.mxu0 %v651
      %880 = vmatpush.msra.mxu0 %v647
      %881 = vmatpush.msra.mxu0 %v643
      %882 = vmatpush.msra.mxu0 %v639
      %883 = vmatpush.msra.mxu0 %v635
      %884 = vmatpush.msra.mxu0 %v631
      %885 = vmatpush.msra.mxu0 %v627
      %886 = vmatpush.msra.mxu0 %v623
      %887 = vmatpush.msra.mxu0 %v619
      %888 = vmatpush.msra.mxu0 %v615
      %889 = vmatpush.msra.mxu0 %v611
      %890 = vmatpush.msra.mxu0 %v607
      %891 = vmatmul.f32.gmra.mxu0 %v602
      %v892 = vpop.f32.mrf.mxu0
      %v893 = vadd.f32 %v813, %v892
      %894 = vdwg.mxu0
      %v896 = vperm.slane %v734, 0
      %v897 = vperm.slane %v734, 1
      %v898 = vperm.slane %v734, 2
      %v899 = vperm.slane %v734, 3
      %v904 = vadd.f32 %v833, %v896
      %v905 = vadd.f32 %v853, %v897
      %v906 = vadd.f32 %v873, %v898
      %v907 = vadd.f32 %v893, %v899
      %v908 = vxor.u32 %v904, 2147483648
      %v909 = vxor.u32 %v905, 2147483648
      %v910 = vxor.u32 %v906, 2147483648
      %v911 = vmul.f32 %v908, 1.442695
      %v912 = vpow.pop %v911
      %v913 = vmul.f32 %v909, 1.442695
      %v914 = vpow.pop %v913
      %v915 = vmul.f32 %v910, 1.442695
      %v916 = vpow.pop %v915
      %v917 = vadd.f32 %v912, 1.0
      %v918 = vadd.f32 %v914, 1.0
      %v919 = vadd.f32 %v916, 1.0
      %v920 = vrcp.pop %v917
      %v921 = vmul.f32 %v917, %v920
      %v922 = vsub.f32 1.0, %v921
      %v923 = vmul.f32 %v920, %v922
      %v924 = vadd.f32 %v920, %v923
      %vm925 = vweird.f32 %v917
      %vm926 = vweird.f32 %v920
      %vm927 = vmor %vm925, %vm926
      %v928 = vsel %vm927, %v920, %v924
      %v929 = vand.u32 2147483647, %v917
      %vm930 = vcmp.eq.f32.partialorder %v929, 8.507059e+37
      %v931 = vand.u32 %v917, 2147483648
      %v932 = vor.u32 1.1754944e-38, %v931
      %v933 = vsel %vm930, %v932, %v928
      %v934 = vmul.f32 1.0, %v933
      %v935 = vrcp.pop %v918
      %v936 = vmul.f32 %v918, %v935
      %v937 = vsub.f32 1.0, %v936
      %v938 = vmul.f32 %v935, %v937
      %v939 = vadd.f32 %v935, %v938
      %vm940 = vweird.f32 %v918
      %vm941 = vweird.f32 %v935
      %vm942 = vmor %vm940, %vm941
      %v943 = vsel %vm942, %v935, %v939
      %v944 = vand.u32 2147483647, %v918
      %vm945 = vcmp.eq.f32.partialorder %v944, 8.507059e+37
      %v946 = vand.u32 %v918, 2147483648
      %v947 = vor.u32 1.1754944e-38, %v946
      %v948 = vsel %vm945, %v947, %v943
      %v949 = vmul.f32 1.0, %v948
      %v950 = vrcp.pop %v919
      %v951 = vmul.f32 %v919, %v950
      %v952 = vsub.f32 1.0, %v951
      %v953 = vmul.f32 %v950, %v952
      %v954 = vadd.f32 %v950, %v953
      %vm955 = vweird.f32 %v919
      %vm956 = vweird.f32 %v950
      %vm957 = vmor %vm955, %vm956
      %v958 = vsel %vm957, %v950, %v954
      %v959 = vand.u32 2147483647, %v919
      %vm960 = vcmp.eq.f32.partialorder %v959, 8.507059e+37
      %v961 = vand.u32 %v919, 2147483648
      %v962 = vor.u32 1.1754944e-38, %v961
      %v963 = vsel %vm960, %v962, %v958
      %v964 = vmul.f32 1.0, %v963
      %v965 = vtanh.pop %v907
      %v966 = vmul.f32 %v949, %v82
      %v967 = vmul.f32 %v934, %v965
      %v968 = vadd.f32 %v966, %v967
      %v969 = vtanh.pop %v968
      %v970 = vmul.f32 %v964, %v969
      %s971 = scalar_lea.vmem %s10, %s83
      %972 = vst [vmem:[%s971] sm:$0xff] %v970
    $region54: #{encoder_attn_decoder_forward.6} parent=1 // loop_footer
      %s78 = sadd.s32 1, %s74
    $region55: #{encoder_attn_decoder_forward.6} parent=1 // loop_footer_branch
      %73 = sbr.rel target = $region51
    $region56: #{encoder_attn_decoder_forward.6} parent=1 // loop_exit
      _
    // Predicated region
    $region57: #{encoder_attn_decoder_forward.6} parent=1 // pred_check
      _
    $region58: #{encoder_attn_decoder_forward.6} parent=1 // pred_check_branch
      %974 = sbr.rel (0) target = $region60
    $region59: #{encoder_attn_decoder_forward.6} parent=1 // pred_region
      _
    $region60: #{encoder_attn_decoder_forward.6} parent=1 // pred_fallthru
      _
    // Predicated region
    $region61: #{encoder_attn_decoder_forward.6} parent=1 // pred_check
      _
    $region62: #{encoder_attn_decoder_forward.6} parent=1 // pred_check_branch
      %976 = sbr.rel (0) target = $region64
    $region63: #{encoder_attn_decoder_forward.6} parent=1 // pred_region
      _
    $region64: #{encoder_attn_decoder_forward.6} parent=1 // pred_fallthru
      _
    %977 = vsyncpa [#allocation3], 1
    %978 = vsyncpa [#allocation5], 1

</llo_original>
